<compile_context>
chip_gen: v7x
topology: tpu7x:2x2x1
jax: 0.10.0
libtpu: 0.0.40
codegen_flags: <defaults>
</compile_context>

<pallas_src>
import jax
import jax.numpy as jnp
from jax.experimental import pallas as pl
from jax.experimental.pallas import tpu as pltpu

OUT_PAD = 128      # lane-dense padded width for the 10-wide fc3 output
NUM_CLASSES = 10


def mlp_kernel(x_ref, w1_ref, b1_ref, w2_ref, b2_ref, w3_ref, b3_ref, o_ref):
    # in-kernel bf16 cast of the streamed x tile (hidden under the next DMA)
    x = x_ref[...].astype(jnp.bfloat16)
    # fc1 + ReLU : bf16 MXU operands, f32 accumulate, f32 elementwise
    h1 = jnp.dot(x, w1_ref[...], preferred_element_type=jnp.float32)
    h1 = jnp.maximum(h1 + b1_ref[...], 0.0)
    # fc2 + ReLU
    h2 = jnp.dot(h1.astype(jnp.bfloat16), w2_ref[...],
                 preferred_element_type=jnp.float32)
    h2 = jnp.maximum(h2 + b2_ref[...], 0.0)
    # fc3 (no activation); output columns 10..127 are zero-padded weights
    h3 = jnp.dot(h2.astype(jnp.bfloat16), w3_ref[...],
                 preferred_element_type=jnp.float32)
    o_ref[...] = (h3 + b3_ref[...]).astype(o_ref.dtype)


def _pick_tile_b(B, cap=1024):
    """~B/2 rows per tile (>=2 grid steps for v7x's two TCs), capped at `cap`,
    rounded down to a sublane multiple of 8."""
    half = (B + 1) // 2
    tile = min(cap, half)
    tile = (tile // 8) * 8
    if tile < 8:
        tile = B            # tiny batch: single full block (block == array dim)
    return tile


def pack_weights(w1, b1, w2, b2, w3, b3):
    """One-time weight prep: bf16 MXU operands + lane-dense fc3 padding.
    Do NOT call this per forward pass."""
    w3_p = jnp.pad(w3, ((0, 0), (0, OUT_PAD - w3.shape[1])))
    b3_p = jnp.pad(b3, ((0, 0), (0, OUT_PAD - b3.shape[1])))
    return (
        w1.astype(jnp.bfloat16), b1.astype(jnp.float32),
        w2.astype(jnp.bfloat16), b2.astype(jnp.float32),
        w3_p.astype(jnp.bfloat16), b3_p.astype(jnp.float32),
    )


def mlp_forward(x, packed, *, tile_b=None):
    w1, b1, w2, b2, w3, b3 = packed
    B, in_dim = x.shape
    h1_dim = w1.shape[1]
    h2_dim = w2.shape[1]

    if tile_b is None:
        tile_b = _pick_tile_b(B)
    grid = (pl.cdiv(B, tile_b),)   # ragged final block handled by Pallas masking

    def const(shape):  # weights/biases: same block every step -> VMEM-resident
        return pl.BlockSpec(shape, lambda i: (0,) * len(shape))

    out = pl.pallas_call(
        mlp_kernel,
        out_shape=jax.ShapeDtypeStruct((B, OUT_PAD), jnp.float32),
        grid=grid,
        in_specs=[
            pl.BlockSpec((tile_b, in_dim), lambda i: (i, 0)),  # x: streamed f32
            const((in_dim, h1_dim)), const((1, h1_dim)),
            const((h1_dim, h2_dim)), const((1, h2_dim)),
            const((h2_dim, OUT_PAD)), const((1, OUT_PAD)),
        ],
        out_specs=pl.BlockSpec((tile_b, OUT_PAD), lambda i: (i, 0)),
        compiler_params=pltpu.CompilerParams(
            dimension_semantics=("parallel",),
            vmem_limit_bytes=32 << 20,
        ),
    )(x, w1, b1, w2, b2, w3, b3)

    return out[:, :NUM_CLASSES]


def init_linear(key, fan_in, fan_out):
    # PyTorch nn.Linear default: U(-1/sqrt(fan_in), 1/sqrt(fan_in)) for W and b.
    kw, kb = jax.random.split(key)
    bound = 1.0 / (fan_in ** 0.5)
    w = jax.random.uniform(kw, (fan_in, fan_out), jnp.float32, -bound, bound)
    b = jax.random.uniform(kb, (1, fan_out), jnp.float32, -bound, bound)
    return w, b


if __name__ == "__main__":
    key = jax.random.PRNGKey(0)
    kx, k1, k2, k3 = jax.random.split(key, 4)

    B = 512  # -> tile_b=256, grid=2: exercises the parallel batch grid
    x = jax.random.normal(kx, (B, 784), jnp.float32)

    w1, b1 = init_linear(k1, 784, 256)
    w2, b2 = init_linear(k2, 256, 128)
    w3, b3 = init_linear(k3, 128, 10)

    packed = pack_weights(w1, b1, w2, b2, w3, b3)   # one-time weight prep

    out = mlp_forward(x, packed)
    out = jax.block_until_ready(out)

    # pure-JAX reference with the same bf16-operand / f32-accumulate recipe.
    # (bf16 MXU operands deviate from PyTorch's f32 matmuls by ~1e-2 relative.)
    xb = x.astype(jnp.bfloat16)
    w1b, w2b, w3b = (w.astype(jnp.bfloat16) for w in (w1, w2, w3))
    ref = jnp.maximum(jnp.dot(xb, w1b, preferred_element_type=jnp.float32) + b1, 0.0)
    ref = jnp.maximum(
        jnp.dot(ref.astype(jnp.bfloat16), w2b, preferred_element_type=jnp.float32) + b2, 0.0)
    ref = jnp.dot(ref.astype(jnp.bfloat16), w3b, preferred_element_type=jnp.float32) + b3

    assert out.shape == (B, 10)
    assert bool(jnp.isfinite(out).all())
    assert jnp.allclose(out, ref, atol=2e-2, rtol=2e-2)

    print("KERNEL_OK")
</pallas_src>

<mosaic_0001>
module attributes {stable_mosaic.version = 11 : i64} {
  func.func @mlp_kernel(%arg0: i32, %arg1: memref<256x784xf32, #tpu.memory_space<vmem>>, %arg2: memref<784x256xbf16, #tpu.memory_space<vmem>>, %arg3: memref<1x256xf32, #tpu.memory_space<vmem>>, %arg4: memref<256x128xbf16, #tpu.memory_space<vmem>>, %arg5: memref<1x128xf32, #tpu.memory_space<vmem>>, %arg6: memref<128x128xbf16, #tpu.memory_space<vmem>>, %arg7: memref<1x128xf32, #tpu.memory_space<vmem>>, %arg8: memref<256x128xf32, #tpu.memory_space<vmem>>) attributes {dimension_semantics = [#tpu.dimension_semantics<parallel>], iteration_bounds = array<i64: 2>, scalar_prefetch = 0 : i64, scratch_operands = 0 : i64, tpu.core_type = #tpu.core_type<tc>, window_params = [{transform_indices = @transform_0, window_bounds = array<i64: 256, 784>}, {pipeline_mode = #tpu.pipeline_mode<synchronous>, transform_indices = @transform_1, window_bounds = array<i64: 784, 256>}, {pipeline_mode = #tpu.pipeline_mode<synchronous>, transform_indices = @transform_2, window_bounds = array<i64: 1, 256>}, {pipeline_mode = #tpu.pipeline_mode<synchronous>, transform_indices = @transform_3, window_bounds = array<i64: 256, 128>}, {pipeline_mode = #tpu.pipeline_mode<synchronous>, transform_indices = @transform_4, window_bounds = array<i64: 1, 128>}, {pipeline_mode = #tpu.pipeline_mode<synchronous>, transform_indices = @transform_5, window_bounds = array<i64: 128, 128>}, {pipeline_mode = #tpu.pipeline_mode<synchronous>, transform_indices = @transform_6, window_bounds = array<i64: 1, 128>}, {transform_indices = @transform_7, window_bounds = array<i64: 256, 128>}]} {
    %c0 = arith.constant 0 : index
    %c0_0 = arith.constant 0 : index
    %0 = vector.load %arg1[%c0, %c0_0] : memref<256x784xf32, #tpu.memory_space<vmem>>, vector<256x784xf32>
    %1 = arith.truncf %0 : vector<256x784xf32> to vector<256x784xbf16>
    %c0_1 = arith.constant 0 : index
    %c0_2 = arith.constant 0 : index
    %2 = vector.load %arg2[%c0_1, %c0_2] : memref<784x256xbf16, #tpu.memory_space<vmem>>, vector<784x256xbf16>
    %cst = arith.constant dense<0.000000e+00> : vector<256x256xf32>
    %3 = tpu.matmul %1, %2, %cst {dimension_numbers = #tpu.dot_dimension_numbers<[1], [0], [0], [1], [0, 0, 1, 1], [], []>} : vector<256x784xbf16>, vector<784x256xbf16>, vector<256x256xf32> -> vector<256x256xf32>
    %c0_3 = arith.constant 0 : index
    %c0_4 = arith.constant 0 : index
    %4 = vector.load %arg3[%c0_3, %c0_4] : memref<1x256xf32, #tpu.memory_space<vmem>>, vector<1x256xf32>
    %5 = vector.broadcast %4 : vector<1x256xf32> to vector<256x256xf32>
    %6 = arith.addf %3, %5 : vector<256x256xf32>
    %cst_5 = arith.constant 0.000000e+00 : f32
    %7 = vector.broadcast %cst_5 : f32 to vector<256x256xf32>
    %8 = arith.maximumf %6, %7 : vector<256x256xf32>
    %9 = arith.truncf %8 : vector<256x256xf32> to vector<256x256xbf16>
    %c0_6 = arith.constant 0 : index
    %c0_7 = arith.constant 0 : index
    %10 = vector.load %arg4[%c0_6, %c0_7] : memref<256x128xbf16, #tpu.memory_space<vmem>>, vector<256x128xbf16>
    %cst_8 = arith.constant dense<0.000000e+00> : vector<256x128xf32>
    %11 = tpu.matmul %9, %10, %cst_8 {dimension_numbers = #tpu.dot_dimension_numbers<[1], [0], [0], [1], [0, 0, 1, 1], [], []>} : vector<256x256xbf16>, vector<256x128xbf16>, vector<256x128xf32> -> vector<256x128xf32>
    %c0_9 = arith.constant 0 : index
    %c0_10 = arith.constant 0 : index
    %12 = vector.load %arg5[%c0_9, %c0_10] : memref<1x128xf32, #tpu.memory_space<vmem>>, vector<1x128xf32>
    %13 = vector.broadcast %12 : vector<1x128xf32> to vector<256x128xf32>
    %14 = arith.addf %11, %13 : vector<256x128xf32>
    %cst_11 = arith.constant 0.000000e+00 : f32
    %15 = vector.broadcast %cst_11 : f32 to vector<256x128xf32>
    %16 = arith.maximumf %14, %15 : vector<256x128xf32>
    %17 = arith.truncf %16 : vector<256x128xf32> to vector<256x128xbf16>
    %c0_12 = arith.constant 0 : index
    %c0_13 = arith.constant 0 : index
    %18 = vector.load %arg6[%c0_12, %c0_13] : memref<128x128xbf16, #tpu.memory_space<vmem>>, vector<128x128xbf16>
    %cst_14 = arith.constant dense<0.000000e+00> : vector<256x128xf32>
    %19 = tpu.matmul %17, %18, %cst_14 {dimension_numbers = #tpu.dot_dimension_numbers<[1], [0], [0], [1], [0, 0, 1, 1], [], []>} : vector<256x128xbf16>, vector<128x128xbf16>, vector<256x128xf32> -> vector<256x128xf32>
    %c0_15 = arith.constant 0 : index
    %c0_16 = arith.constant 0 : index
    %20 = vector.load %arg7[%c0_15, %c0_16] : memref<1x128xf32, #tpu.memory_space<vmem>>, vector<1x128xf32>
    %21 = vector.broadcast %20 : vector<1x128xf32> to vector<256x128xf32>
    %22 = arith.addf %19, %21 : vector<256x128xf32>
    %c0_17 = arith.constant 0 : index
    %c0_18 = arith.constant 0 : index
    %23 = vector.load %arg8[%c0_17, %c0_18] : memref<256x128xf32, #tpu.memory_space<vmem>>, vector<256x128xf32>
    tpu.vector_store %arg8[%c0_17, %c0_18], %22 {strides = array<i32>} : memref<256x128xf32, #tpu.memory_space<vmem>>, vector<256x128xf32>,
    return
  }
  func.func @transform_0(%arg0: i32) -> (i32, i32) {
    %c0_i32 = arith.constant 0 : i32
    %c0_i32_0 = arith.constant 0 : i32
    return %arg0, %c0_i32 : i32, i32
  }
  func.func @transform_1(%arg0: i32) -> (i32, i32) {
    %c0_i32 = arith.constant 0 : i32
    %c0_i32_0 = arith.constant 0 : i32
    %c0_i32_1 = arith.constant 0 : i32
    return %c0_i32, %c0_i32_0 : i32, i32
  }
  func.func @transform_2(%arg0: i32) -> (i32, i32) {
    %c0_i32 = arith.constant 0 : i32
    %c0_i32_0 = arith.constant 0 : i32
    %c0_i32_1 = arith.constant 0 : i32
    return %c0_i32, %c0_i32_0 : i32, i32
  }
  func.func @transform_3(%arg0: i32) -> (i32, i32) {
    %c0_i32 = arith.constant 0 : i32
    %c0_i32_0 = arith.constant 0 : i32
    %c0_i32_1 = arith.constant 0 : i32
    return %c0_i32, %c0_i32_0 : i32, i32
  }
  func.func @transform_4(%arg0: i32) -> (i32, i32) {
    %c0_i32 = arith.constant 0 : i32
    %c0_i32_0 = arith.constant 0 : i32
    %c0_i32_1 = arith.constant 0 : i32
    return %c0_i32, %c0_i32_0 : i32, i32
  }
  func.func @transform_5(%arg0: i32) -> (i32, i32) {
    %c0_i32 = arith.constant 0 : i32
    %c0_i32_0 = arith.constant 0 : i32
    %c0_i32_1 = arith.constant 0 : i32
    return %c0_i32, %c0_i32_0 : i32, i32
  }
  func.func @transform_6(%arg0: i32) -> (i32, i32) {
    %c0_i32 = arith.constant 0 : i32
    %c0_i32_0 = arith.constant 0 : i32
    %c0_i32_1 = arith.constant 0 : i32
    return %c0_i32, %c0_i32_0 : i32, i32
  }
  func.func @transform_7(%arg0: i32) -> (i32, i32) {
    %c0_i32 = arith.constant 0 : i32
    %c0_i32_0 = arith.constant 0 : i32
    return %arg0, %c0_i32 : i32, i32
  }
}

</mosaic_0001>

<llo_original>
// kernel: tpu_custom_call.1
$region0: #{tpu_custom_call.1}
  #allocation0 [shape = 'u32[]', space=smem, size = 0x4, offset = 0x4, fixed_abs, tag = 'smem constant byte address 0x4 - core index']
  #allocation1 [shape = 'u32[144,128]{1,0:T(1,128)}', space=vmem, size = 0x12000, scoped, tag = 'internal scratch']
  %s0 = inlined_call_operand.vmem [shape: f32[512,784], index: 0, kind: input, shape index: {}]
  %s1 = inlined_call_operand.vmem [shape: bf16[784,256], index: 1, kind: input, shape index: {}]
  %s2 = inlined_call_operand.vmem [shape: f32[1,256], index: 2, kind: input, shape index: {}]
  %s3 = inlined_call_operand.vmem [shape: bf16[256,128], index: 3, kind: input, shape index: {}]
  %s4 = inlined_call_operand.vmem [shape: f32[1,128], index: 4, kind: input, shape index: {}]
  %s5 = inlined_call_operand.vmem [shape: bf16[128,128], index: 5, kind: input, shape index: {}]
  %s6 = inlined_call_operand.vmem [shape: f32[1,128], index: 6, kind: input, shape index: {}]
  %s7 = inlined_call_operand.hbm [shape: f32[512,128], index: 7, kind: output, shape index: {}]
  %s8 = sld [smem:[#allocation0]]
  $region61: #{tpu_custom_call.1} parent=0
    _
  %s10 = ssub.s32 1, %s8
  %s11 = scalar_select 0, %s10, %s8
  $region1: #{tpu_custom_call.1} parent=0
    #allocation2 [shape = 'u8[262144]{0}', space=vmem, size = 0x40000, scoped, tag = 'output window, operand 0']
    #allocation3 [shape = 's32[2]{0}', space=sflag, size = 0x8, scoped, tag = 'scoped memory for tpu_custom_call.1']
    %12 = vsyncpa [#allocation3], 0
    %s13 = scalar_lea.sflag [#allocation3], 1
    %14 = vsyncpa %s13, 0
    loop: start=0, step=1, limit=4
    $region2: #{tpu_custom_call.1} parent=1 // loop_pre_header
      _
    $region3: #{tpu_custom_call.1} parent=1 // loop_header
      %s16 = sphi 0, %s20
      %p17 = scmp.ge.s32.totalorder %s16, 4
      %s26 = sphi 0, %s28
      %s29 = sphi 0, %s26
      %s30 = sphi 0, %s29
      %s46 = sphi 0, %s30
      %s50 = sphi 0, %s50
      %s52 = sphi 0, %s50
      %s53 = sphi 0, %s52
      %s67 = sphi 0, %s53
      %s71 = sphi 0, %s71
      %s73 = sphi 0, %s71
      %s74 = sphi 0, %s73
      %s88 = sphi 0, %s74
      %s92 = sphi 0, %s92
      %s94 = sphi 0, %s92
      %s95 = sphi 0, %s94
      %s109 = sphi 0, %s95
      %s113 = sphi 0, %s113
      %s115 = sphi 0, %s113
      %s116 = sphi 0, %s115
      %s130 = sphi 0, %s116
      %s134 = sphi 0, %s134
      %s136 = sphi 0, %s134
      %s137 = sphi 0, %s136
      %s151 = sphi 0, %s137
      %s155 = sphi 0, %s155
      %s157 = sphi 0, %s155
      %s158 = sphi 0, %s157
      %s172 = sphi 0, %s158
      %s178 = sphi 0, %s180
      %s181 = sphi 0, %s178
      %s182 = sphi 0, %s181
      %s198 = sphi 0, %s182
    $region4: #{tpu_custom_call.1} parent=1 // loop_header_branch
      %19 = sbr.rel (%p17) target = $region8
    $region5: #{tpu_custom_call.1} parent=1 // loop_body
      %s21 = ssub.s32 %s16, 1
      %s22 = ssub.s32 %s16, 2
      %s23 = sadd.s32 %s16, 1
      %s24 = ssub.s32 %s16, %s23
      %p25 = scmp.eq.s32.totalorder %s24, 0
      %s27 = sadd.s32 %s26, 1
      %s28 = scalar_select %p25, %s26, %s27
      %p31 = pneg %p25
      %p32 = scmp.eq.s32.totalorder %s16, 1
      %p33 = por %p31, %p32
      %p34 = scmp.ne.s32.totalorder %s26, %s29
      %p35 = scmp.eq.s32.totalorder %s16, 0
      %p36 = por %p34, %p35
      %p37 = scmp.ne.s32.totalorder %s26, %s29
      %p38 = scmp.eq.s32.totalorder %s21, 1
      %p39 = por %p37, %p38
      %p40 = scmp.ne.s32.totalorder %s29, %s30
      %p41 = scmp.eq.s32.totalorder %s21, 0
      %p42 = por %p40, %p41
      %p43 = scmp.ne.s32.totalorder %s29, %s30
      %p44 = scmp.eq.s32.totalorder %s22, 1
      %p45 = por %p43, %p44
      %p47 = scmp.ne.s32.totalorder %s30, %s46
      %p48 = scmp.eq.s32.totalorder %s22, 0
      %p49 = por %p47, %p48
      %s51 = sadd.s32 %s50, 1
      %p54 = scmp.eq.s32.totalorder %s16, 1
      %p55 = scmp.ne.s32.totalorder %s50, %s52
      %p56 = scmp.eq.s32.totalorder %s16, 0
      %p57 = por %p55, %p56
      %p58 = scmp.ne.s32.totalorder %s50, %s52
      %p59 = scmp.eq.s32.totalorder %s21, 1
      %p60 = por %p58, %p59
      %p61 = scmp.ne.s32.totalorder %s52, %s53
      %p62 = scmp.eq.s32.totalorder %s21, 0
      %p63 = por %p61, %p62
      %p64 = scmp.ne.s32.totalorder %s52, %s53
      %p65 = scmp.eq.s32.totalorder %s22, 1
      %p66 = por %p64, %p65
      %p68 = scmp.ne.s32.totalorder %s53, %s67
      %p69 = scmp.eq.s32.totalorder %s22, 0
      %p70 = por %p68, %p69
      %s72 = sadd.s32 %s71, 1
      %p75 = scmp.eq.s32.totalorder %s16, 1
      %p76 = scmp.ne.s32.totalorder %s71, %s73
      %p77 = scmp.eq.s32.totalorder %s16, 0
      %p78 = por %p76, %p77
      %p79 = scmp.ne.s32.totalorder %s71, %s73
      %p80 = scmp.eq.s32.totalorder %s21, 1
      %p81 = por %p79, %p80
      %p82 = scmp.ne.s32.totalorder %s73, %s74
      %p83 = scmp.eq.s32.totalorder %s21, 0
      %p84 = por %p82, %p83
      %p85 = scmp.ne.s32.totalorder %s73, %s74
      %p86 = scmp.eq.s32.totalorder %s22, 1
      %p87 = por %p85, %p86
      %p89 = scmp.ne.s32.totalorder %s74, %s88
      %p90 = scmp.eq.s32.totalorder %s22, 0
      %p91 = por %p89, %p90
      %s93 = sadd.s32 %s92, 1
      %p96 = scmp.eq.s32.totalorder %s16, 1
      %p97 = scmp.ne.s32.totalorder %s92, %s94
      %p98 = scmp.eq.s32.totalorder %s16, 0
      %p99 = por %p97, %p98
      %p100 = scmp.ne.s32.totalorder %s92, %s94
      %p101 = scmp.eq.s32.totalorder %s21, 1
      %p102 = por %p100, %p101
      %p103 = scmp.ne.s32.totalorder %s94, %s95
      %p104 = scmp.eq.s32.totalorder %s21, 0
      %p105 = por %p103, %p104
      %p106 = scmp.ne.s32.totalorder %s94, %s95
      %p107 = scmp.eq.s32.totalorder %s22, 1
      %p108 = por %p106, %p107
      %p110 = scmp.ne.s32.totalorder %s95, %s109
      %p111 = scmp.eq.s32.totalorder %s22, 0
      %p112 = por %p110, %p111
      %s114 = sadd.s32 %s113, 1
      %p117 = scmp.eq.s32.totalorder %s16, 1
      %p118 = scmp.ne.s32.totalorder %s113, %s115
      %p119 = scmp.eq.s32.totalorder %s16, 0
      %p120 = por %p118, %p119
      %p121 = scmp.ne.s32.totalorder %s113, %s115
      %p122 = scmp.eq.s32.totalorder %s21, 1
      %p123 = por %p121, %p122
      %p124 = scmp.ne.s32.totalorder %s115, %s116
      %p125 = scmp.eq.s32.totalorder %s21, 0
      %p126 = por %p124, %p125
      %p127 = scmp.ne.s32.totalorder %s115, %s116
      %p128 = scmp.eq.s32.totalorder %s22, 1
      %p129 = por %p127, %p128
      %p131 = scmp.ne.s32.totalorder %s116, %s130
      %p132 = scmp.eq.s32.totalorder %s22, 0
      %p133 = por %p131, %p132
      %s135 = sadd.s32 %s134, 1
      %p138 = scmp.eq.s32.totalorder %s16, 1
      %p139 = scmp.ne.s32.totalorder %s134, %s136
      %p140 = scmp.eq.s32.totalorder %s16, 0
      %p141 = por %p139, %p140
      %p142 = scmp.ne.s32.totalorder %s134, %s136
      %p143 = scmp.eq.s32.totalorder %s21, 1
      %p144 = por %p142, %p143
      %p145 = scmp.ne.s32.totalorder %s136, %s137
      %p146 = scmp.eq.s32.totalorder %s21, 0
      %p147 = por %p145, %p146
      %p148 = scmp.ne.s32.totalorder %s136, %s137
      %p149 = scmp.eq.s32.totalorder %s22, 1
      %p150 = por %p148, %p149
      %p152 = scmp.ne.s32.totalorder %s137, %s151
      %p153 = scmp.eq.s32.totalorder %s22, 0
      %p154 = por %p152, %p153
      %s156 = sadd.s32 %s155, 1
      %p159 = scmp.eq.s32.totalorder %s16, 1
      %p160 = scmp.ne.s32.totalorder %s155, %s157
      %p161 = scmp.eq.s32.totalorder %s16, 0
      %p162 = por %p160, %p161
      %p163 = scmp.ne.s32.totalorder %s155, %s157
      %p164 = scmp.eq.s32.totalorder %s21, 1
      %p165 = por %p163, %p164
      %p166 = scmp.ne.s32.totalorder %s157, %s158
      %p167 = scmp.eq.s32.totalorder %s21, 0
      %p168 = por %p166, %p167
      %p169 = scmp.ne.s32.totalorder %s157, %s158
      %p170 = scmp.eq.s32.totalorder %s22, 1
      %p171 = por %p169, %p170
      %p173 = scmp.ne.s32.totalorder %s158, %s172
      %p174 = scmp.eq.s32.totalorder %s22, 0
      %p175 = por %p173, %p174
      %s176 = ssub.s32 %s16, %s23
      %p177 = scmp.eq.s32.totalorder %s176, 0
      %s179 = sadd.s32 %s178, 1
      %s180 = scalar_select %p177, %s178, %s179
      %p183 = pneg %p177
      %p184 = scmp.eq.s32.totalorder %s16, 1
      %p185 = por %p183, %p184
      %p186 = scmp.ne.s32.totalorder %s178, %s181
      %p187 = scmp.eq.s32.totalorder %s16, 0
      %p188 = por %p186, %p187
      %p189 = scmp.ne.s32.totalorder %s178, %s181
      %p190 = scmp.eq.s32.totalorder %s21, 1
      %p191 = por %p189, %p190
      %p192 = scmp.ne.s32.totalorder %s181, %s182
      %p193 = scmp.eq.s32.totalorder %s21, 0
      %p194 = por %p192, %p193
      %p195 = scmp.ne.s32.totalorder %s181, %s182
      %p196 = scmp.eq.s32.totalorder %s22, 1
      %p197 = por %p195, %p196
      %p199 = scmp.ne.s32.totalorder %s182, %s198
      %p200 = scmp.eq.s32.totalorder %s22, 0
      %p201 = por %p199, %p200
      %p202 = scmp.le.s32.totalorder 1, %s16
      %p203 = scmp.lt.s32.totalorder %s16, 3
      %p204 = pnand %p202, %p203
      %p205 = pneg %p204
      // Predicated region
      $region9: #{tpu_custom_call.1} parent=5 // pred_check
        _
      $region10: #{tpu_custom_call.1} parent=5 // pred_check_branch
        %207 = sbr.rel (%p204) target = $region12
      $region11: #{tpu_custom_call.1} parent=5 // pred_region
        %s208 = ssub.s32 %s16, 1
        // Predicated region
        $region13: #{tpu_custom_call.1} parent=11 // pred_check
          %p209 = pneg %p63
        $region14: #{tpu_custom_call.1} parent=11 // pred_check_branch
          %211 = sbr.rel (%p209) target = $region16
        $region15: #{tpu_custom_call.1} parent=11 // pred_region
          _
        $region16: #{tpu_custom_call.1} parent=11 // pred_fallthru
          _
        // Predicated region
        $region17: #{tpu_custom_call.1} parent=11 // pred_check
          %p212 = pneg %p84
        $region18: #{tpu_custom_call.1} parent=11 // pred_check_branch
          %214 = sbr.rel (%p212) target = $region20
        $region19: #{tpu_custom_call.1} parent=11 // pred_region
          _
        $region20: #{tpu_custom_call.1} parent=11 // pred_fallthru
          _
        // Predicated region
        $region21: #{tpu_custom_call.1} parent=11 // pred_check
          %p215 = pneg %p105
        $region22: #{tpu_custom_call.1} parent=11 // pred_check_branch
          %217 = sbr.rel (%p215) target = $region24
        $region23: #{tpu_custom_call.1} parent=11 // pred_region
          _
        $region24: #{tpu_custom_call.1} parent=11 // pred_fallthru
          _
        // Predicated region
        $region25: #{tpu_custom_call.1} parent=11 // pred_check
          %p218 = pneg %p126
        $region26: #{tpu_custom_call.1} parent=11 // pred_check_branch
          %220 = sbr.rel (%p218) target = $region28
        $region27: #{tpu_custom_call.1} parent=11 // pred_region
          _
        $region28: #{tpu_custom_call.1} parent=11 // pred_fallthru
          _
        // Predicated region
        $region29: #{tpu_custom_call.1} parent=11 // pred_check
          %p221 = pneg %p147
        $region30: #{tpu_custom_call.1} parent=11 // pred_check_branch
          %223 = sbr.rel (%p221) target = $region32
        $region31: #{tpu_custom_call.1} parent=11 // pred_region
          _
        $region32: #{tpu_custom_call.1} parent=11 // pred_fallthru
          _
        // Predicated region
        $region33: #{tpu_custom_call.1} parent=11 // pred_check
          %p224 = pneg %p168
        $region34: #{tpu_custom_call.1} parent=11 // pred_check_branch
          %226 = sbr.rel (%p224) target = $region36
        $region35: #{tpu_custom_call.1} parent=11 // pred_region
          _
        $region36: #{tpu_custom_call.1} parent=11 // pred_fallthru
          _
      $region12: #{tpu_custom_call.1} parent=5 // pred_fallthru
        _
      %p227 = scmp.lt.s32.totalorder %s16, 2
      // Predicated region
      $region37: #{tpu_custom_call.1} parent=5 // pred_check
        %p228 = pneg %p227
      $region38: #{tpu_custom_call.1} parent=5 // pred_check_branch
        %230 = sbr.rel (%p228) target = $region40
      $region39: #{tpu_custom_call.1} parent=5 // pred_region
        // Predicated region
        $region41: #{tpu_custom_call.1} parent=39 // pred_check
          %p231 = pneg %p36
        $region42: #{tpu_custom_call.1} parent=39 // pred_check_branch
          %233 = sbr.rel (%p231) target = $region44
        $region43: #{tpu_custom_call.1} parent=39 // pred_region
          %s234 = smul.u32 32, %s16
          %p235 = scmp.lt.s32.totalorder %s234, 63
          %s236 = scalar_select %p235, %s234, 63
          %s237 = smul.addr %s236, 7
          %s238 = smul.addr %s237, 8
          %s239 = scalar_lea.vmem %s0, %s238
          %s240 = smul.u32 32, %s16
        $region44: #{tpu_custom_call.1} parent=39 // pred_fallthru
          _
      $region40: #{tpu_custom_call.1} parent=5 // pred_fallthru
        _
      %p241 = scmp.le.s32.totalorder 1, %s16
      %p242 = scmp.lt.s32.totalorder %s16, 3
      %p243 = pnand %p241, %p242
      %p244 = pneg %p243
      // Predicated region
      $region45: #{tpu_custom_call.1} parent=5 // pred_check
        _
      $region46: #{tpu_custom_call.1} parent=5 // pred_check_branch
        %246 = sbr.rel (%p243) target = $region48
      $region47: #{tpu_custom_call.1} parent=5 // pred_region
        %s247 = ssub.s32 %s16, 1
        %s248 = smul.u32 32, %s21
        %p249 = scmp.lt.s32.totalorder %s248, 63
        %s250 = scalar_select %p249, %s248, 63
        %s251 = smul.addr %s250, 7
        %s252 = smul.addr %s251, 8
        %s253 = scalar_lea.vmem %s0, %s252
        %p254 = pneg %p42
        %p255 = pneg %p39
        %p256 = pneg %p63
        %p257 = pneg %p60
        %p258 = pneg %p84
        %p259 = pneg %p81
        %p260 = pneg %p105
        %p261 = pneg %p102
        %p262 = pneg %p126
        %p263 = pneg %p123
        %p264 = pneg %p147
        %p265 = pneg %p144
        %p266 = pneg %p168
        %p267 = pneg %p165
        %p268 = pneg %p194
        %p269 = pneg %p191
        %s270 = sand.u32 %s181, 1
        %s271 = scalar_lea.sflag [#allocation3], %s270
        %s272 = sand.u32 %s181, 1
        %s273 = smul.addr %s272, 256
        %s274 = scalar_lea.vmem [#allocation2], %s273
        %s275 = smul.u32 32, %s21
        %p276 = scmp.lt.s32.totalorder %s275, 63
        %s277 = scalar_select %p276, %s275, 63
        %s278 = smul.addr %s277, 7
        %s279 = smul.addr %s278, 8
        %s280 = scalar_lea.vmem %s0, %s279
        %s281 = smul.u32 32, %s21
        %s282 = smul.u32 32, %s21
        %v284 = vld [vmem:[%s280] sm:$0xff]
        %v285 = vld [vmem:[%s280 + $0x8] sm:$0xff]
        %v286 = vld [vmem:[%s280 + $0x10] sm:$0xff]
        %v287 = vld [vmem:[%s280 + $0x18] sm:$0xff]
        %v288 = vld [vmem:[%s280 + $0x20] sm:$0xff]
        %v289 = vld [vmem:[%s280 + $0x28] sm:$0xff]
        %v290 = vld [vmem:[%s280 + $0x30] sm:$0xff]
        %v291 = vld [vmem:[%s280 + $0x38] sm:$0xff]
        %v292 = vld [vmem:[%s280 + $0x40] sm:$0xff]
        %v293 = vld [vmem:[%s280 + $0x48] sm:$0xff]
        %v294 = vld [vmem:[%s280 + $0x50] sm:$0xff]
        %v295 = vld [vmem:[%s280 + $0x58] sm:$0xff]
        %v296 = vld [vmem:[%s280 + $0x60] sm:$0xff]
        %v297 = vld [vmem:[%s280 + $0x68] sm:$0xff]
        %v298 = vld [vmem:[%s280 + $0x70] sm:$0xff]
        %v299 = vld [vmem:[%s280 + $0x78] sm:$0xff]
        %v300 = vld [vmem:[%s280 + $0x80] sm:$0xff]
        %v301 = vld [vmem:[%s280 + $0x88] sm:$0xff]
        %v302 = vld [vmem:[%s280 + $0x90] sm:$0xff]
        %v303 = vld [vmem:[%s280 + $0x98] sm:$0xff]
        %v304 = vld [vmem:[%s280 + $0xa0] sm:$0xff]
        %v305 = vld [vmem:[%s280 + $0xa8] sm:$0xff]
        %v306 = vld [vmem:[%s280 + $0xb0] sm:$0xff]
        %v307 = vld [vmem:[%s280 + $0xb8] sm:$0xff]
        %v308 = vld [vmem:[%s280 + $0xc0] sm:$0xff]
        %v309 = vld [vmem:[%s280 + $0xc8] sm:$0xff]
        %v310 = vld [vmem:[%s280 + $0xd0] sm:$0xff]
        %v311 = vld [vmem:[%s280 + $0xd8] sm:$0xff]
        %v312 = vld [vmem:[%s280 + $0xe0] sm:$0xff]
        %v313 = vld [vmem:[%s280 + $0xe8] sm:$0xff]
        %v314 = vld [vmem:[%s280 + $0xf0] sm:$0xff]
        %v315 = vld [vmem:[%s280 + $0xf8] sm:$0xff]
        %v316 = vld [vmem:[%s280 + $0x100] sm:$0xff]
        %v317 = vld [vmem:[%s280 + $0x108] sm:$0xff]
        %v318 = vld [vmem:[%s280 + $0x110] sm:$0xff]
        %v319 = vld [vmem:[%s280 + $0x118] sm:$0xff]
        %v320 = vld [vmem:[%s280 + $0x120] sm:$0xff]
        %v321 = vld [vmem:[%s280 + $0x128] sm:$0xff]
        %v322 = vld [vmem:[%s280 + $0x130] sm:$0xff]
        %v323 = vld [vmem:[%s280 + $0x138] sm:$0xff]
        %v324 = vld [vmem:[%s280 + $0x140] sm:$0xff]
        %v325 = vld [vmem:[%s280 + $0x148] sm:$0xff]
        %v326 = vld [vmem:[%s280 + $0x150] sm:$0xff]
        %v327 = vld [vmem:[%s280 + $0x158] sm:$0xff]
        %v328 = vld [vmem:[%s280 + $0x160] sm:$0xff]
        %v329 = vld [vmem:[%s280 + $0x168] sm:$0xff]
        %v330 = vld [vmem:[%s280 + $0x170] sm:$0xff]
        %v331 = vld [vmem:[%s280 + $0x178] sm:$0xff]
        %v332 = vld [vmem:[%s280 + $0x180] sm:$0xff]
        %v333 = vld [vmem:[%s280 + $0x188] sm:$0xff]
        %v334 = vld [vmem:[%s280 + $0x190] sm:$0xff]
        %v335 = vld [vmem:[%s280 + $0x198] sm:$0xff]
        %v336 = vld [vmem:[%s280 + $0x1a0] sm:$0xff]
        %v337 = vld [vmem:[%s280 + $0x1a8] sm:$0xff]
        %v338 = vld [vmem:[%s280 + $0x1b0] sm:$0xff]
        %v339 = vld [vmem:[%s280 + $0x1b8] sm:$0xff]
        %v340 = vld [vmem:[%s280 + $0x1c0] sm:$0xff]
        %v341 = vld [vmem:[%s280 + $0x1c8] sm:$0xff]
        %v342 = vld [vmem:[%s280 + $0x1d0] sm:$0xff]
        %v343 = vld [vmem:[%s280 + $0x1d8] sm:$0xff]
        %v344 = vld [vmem:[%s280 + $0x1e0] sm:$0xff]
        %v345 = vld [vmem:[%s280 + $0x1e8] sm:$0xff]
        %v346 = vld [vmem:[%s280 + $0x1f0] sm:$0xff]
        %v347 = vld [vmem:[%s280 + $0x1f8] sm:$0xff]
        %v348 = vld [vmem:[%s280 + $0x200] sm:$0xff]
        %v349 = vld [vmem:[%s280 + $0x208] sm:$0xff]
        %v350 = vld [vmem:[%s280 + $0x210] sm:$0xff]
        %v351 = vld [vmem:[%s280 + $0x218] sm:$0xff]
        %v352 = vld [vmem:[%s280 + $0x220] sm:$0xff]
        %v353 = vld [vmem:[%s280 + $0x228] sm:$0xff]
        %v354 = vld [vmem:[%s280 + $0x230] sm:$0xff]
        %v355 = vld [vmem:[%s280 + $0x238] sm:$0xff]
        %v356 = vld [vmem:[%s280 + $0x240] sm:$0xff]
        %v357 = vld [vmem:[%s280 + $0x248] sm:$0xff]
        %v358 = vld [vmem:[%s280 + $0x250] sm:$0xff]
        %v359 = vld [vmem:[%s280 + $0x258] sm:$0xff]
        %v360 = vld [vmem:[%s280 + $0x260] sm:$0xff]
        %v361 = vld [vmem:[%s280 + $0x268] sm:$0xff]
        %v362 = vld [vmem:[%s280 + $0x270] sm:$0xff]
        %v363 = vld [vmem:[%s280 + $0x278] sm:$0xff]
        %v364 = vld [vmem:[%s280 + $0x280] sm:$0xff]
        %v365 = vld [vmem:[%s280 + $0x288] sm:$0xff]
        %v366 = vld [vmem:[%s280 + $0x290] sm:$0xff]
        %v367 = vld [vmem:[%s280 + $0x298] sm:$0xff]
        %v368 = vld [vmem:[%s280 + $0x2a0] sm:$0xff]
        %v369 = vld [vmem:[%s280 + $0x2a8] sm:$0xff]
        %v370 = vld [vmem:[%s280 + $0x2b0] sm:$0xff]
        %v371 = vld [vmem:[%s280 + $0x2b8] sm:$0xff]
        %v372 = vld [vmem:[%s280 + $0x2c0] sm:$0xff]
        %v373 = vld [vmem:[%s280 + $0x2c8] sm:$0xff]
        %v374 = vld [vmem:[%s280 + $0x2d0] sm:$0xff]
        %v375 = vld [vmem:[%s280 + $0x2d8] sm:$0xff]
        %v376 = vld [vmem:[%s280 + $0x2e0] sm:$0xff]
        %v377 = vld [vmem:[%s280 + $0x2e8] sm:$0xff]
        %v378 = vld [vmem:[%s280 + $0x2f0] sm:$0xff]
        %v379 = vld [vmem:[%s280 + $0x2f8] sm:$0xff]
        %v380 = vld [vmem:[%s280 + $0x300] sm:$0xff]
        %v381 = vld [vmem:[%s280 + $0x308] sm:$0xff]
        %v382 = vld [vmem:[%s280 + $0x310] sm:$0xff]
        %v383 = vld [vmem:[%s280 + $0x318] sm:$0xff]
        %v384 = vld [vmem:[%s280 + $0x320] sm:$0xff]
        %v385 = vld [vmem:[%s280 + $0x328] sm:$0xff]
        %v386 = vld [vmem:[%s280 + $0x330] sm:$0xff]
        %v387 = vld [vmem:[%s280 + $0x338] sm:$0xff]
        %v388 = vld [vmem:[%s280 + $0x340] sm:$0xff]
        %v389 = vld [vmem:[%s280 + $0x348] sm:$0xff]
        %v390 = vld [vmem:[%s280 + $0x350] sm:$0xff]
        %v391 = vld [vmem:[%s280 + $0x358] sm:$0xff]
        %v392 = vld [vmem:[%s280 + $0x360] sm:$0xff]
        %v393 = vld [vmem:[%s280 + $0x368] sm:$0xff]
        %v394 = vld [vmem:[%s280 + $0x370] sm:$0xff]
        %v395 = vld [vmem:[%s280 + $0x378] sm:$0xff]
        %v396 = vld [vmem:[%s280 + $0x380] sm:$0xff]
        %v397 = vld [vmem:[%s280 + $0x388] sm:$0xff]
        %v398 = vld [vmem:[%s280 + $0x390] sm:$0xff]
        %v399 = vld [vmem:[%s280 + $0x398] sm:$0xff]
        %v400 = vld [vmem:[%s280 + $0x3a0] sm:$0xff]
        %v401 = vld [vmem:[%s280 + $0x3a8] sm:$0xff]
        %v402 = vld [vmem:[%s280 + $0x3b0] sm:$0xff]
        %v403 = vld [vmem:[%s280 + $0x3b8] sm:$0xff]
        %v404 = vld [vmem:[%s280 + $0x3c0] sm:$0xff]
        %v405 = vld [vmem:[%s280 + $0x3c8] sm:$0xff]
        %v406 = vld [vmem:[%s280 + $0x3d0] sm:$0xff]
        %v407 = vld [vmem:[%s280 + $0x3d8] sm:$0xff]
        %v408 = vld [vmem:[%s280 + $0x3e0] sm:$0xff]
        %v409 = vld [vmem:[%s280 + $0x3e8] sm:$0xff]
        %v410 = vld [vmem:[%s280 + $0x3f0] sm:$0xff]
        %v411 = vld [vmem:[%s280 + $0x3f8] sm:$0xff]
        %v412 = vld [vmem:[%s280 + $0x400] sm:$0xff]
        %v413 = vld [vmem:[%s280 + $0x408] sm:$0xff]
        %v414 = vld [vmem:[%s280 + $0x410] sm:$0xff]
        %v415 = vld [vmem:[%s280 + $0x418] sm:$0xff]
        %v416 = vld [vmem:[%s280 + $0x420] sm:$0xff]
        %v417 = vld [vmem:[%s280 + $0x428] sm:$0xff]
        %v418 = vld [vmem:[%s280 + $0x430] sm:$0xff]
        %v419 = vld [vmem:[%s280 + $0x438] sm:$0xff]
        %v420 = vld [vmem:[%s280 + $0x440] sm:$0xff]
        %v421 = vld [vmem:[%s280 + $0x448] sm:$0xff]
        %v422 = vld [vmem:[%s280 + $0x450] sm:$0xff]
        %v423 = vld [vmem:[%s280 + $0x458] sm:$0xff]
        %v424 = vld [vmem:[%s280 + $0x460] sm:$0xff]
        %v425 = vld [vmem:[%s280 + $0x468] sm:$0xff]
        %v426 = vld [vmem:[%s280 + $0x470] sm:$0xff]
        %v427 = vld [vmem:[%s280 + $0x478] sm:$0xff]
        %v428 = vld [vmem:[%s280 + $0x480] sm:$0xff]
        %v429 = vld [vmem:[%s280 + $0x488] sm:$0xff]
        %v430 = vld [vmem:[%s280 + $0x490] sm:$0xff]
        %v431 = vld [vmem:[%s280 + $0x498] sm:$0xff]
        %v432 = vld [vmem:[%s280 + $0x4a0] sm:$0xff]
        %v433 = vld [vmem:[%s280 + $0x4a8] sm:$0xff]
        %v434 = vld [vmem:[%s280 + $0x4b0] sm:$0xff]
        %v435 = vld [vmem:[%s280 + $0x4b8] sm:$0xff]
        %v436 = vld [vmem:[%s280 + $0x4c0] sm:$0xff]
        %v437 = vld [vmem:[%s280 + $0x4c8] sm:$0xff]
        %v438 = vld [vmem:[%s280 + $0x4d0] sm:$0xff]
        %v439 = vld [vmem:[%s280 + $0x4d8] sm:$0xff]
        %v440 = vld [vmem:[%s280 + $0x4e0] sm:$0xff]
        %v441 = vld [vmem:[%s280 + $0x4e8] sm:$0xff]
        %v442 = vld [vmem:[%s280 + $0x4f0] sm:$0xff]
        %v443 = vld [vmem:[%s280 + $0x4f8] sm:$0xff]
        %v444 = vld [vmem:[%s280 + $0x500] sm:$0xff]
        %v445 = vld [vmem:[%s280 + $0x508] sm:$0xff]
        %v446 = vld [vmem:[%s280 + $0x510] sm:$0xff]
        %v447 = vld [vmem:[%s280 + $0x518] sm:$0xff]
        %v448 = vld [vmem:[%s280 + $0x520] sm:$0xff]
        %v449 = vld [vmem:[%s280 + $0x528] sm:$0xff]
        %v450 = vld [vmem:[%s280 + $0x530] sm:$0xff]
        %v451 = vld [vmem:[%s280 + $0x538] sm:$0xff]
        %v452 = vld [vmem:[%s280 + $0x540] sm:$0xff]
        %v453 = vld [vmem:[%s280 + $0x548] sm:$0xff]
        %v454 = vld [vmem:[%s280 + $0x550] sm:$0xff]
        %v455 = vld [vmem:[%s280 + $0x558] sm:$0xff]
        %v456 = vld [vmem:[%s280 + $0x560] sm:$0xff]
        %v457 = vld [vmem:[%s280 + $0x568] sm:$0xff]
        %v458 = vld [vmem:[%s280 + $0x570] sm:$0xff]
        %v459 = vld [vmem:[%s280 + $0x578] sm:$0xff]
        %v460 = vld [vmem:[%s280 + $0x580] sm:$0xff]
        %v461 = vld [vmem:[%s280 + $0x588] sm:$0xff]
        %v462 = vld [vmem:[%s280 + $0x590] sm:$0xff]
        %v463 = vld [vmem:[%s280 + $0x598] sm:$0xff]
        %v464 = vld [vmem:[%s280 + $0x5a0] sm:$0xff]
        %v465 = vld [vmem:[%s280 + $0x5a8] sm:$0xff]
        %v466 = vld [vmem:[%s280 + $0x5b0] sm:$0xff]
        %v467 = vld [vmem:[%s280 + $0x5b8] sm:$0xff]
        %v468 = vld [vmem:[%s280 + $0x5c0] sm:$0xff]
        %v469 = vld [vmem:[%s280 + $0x5c8] sm:$0xff]
        %v470 = vld [vmem:[%s280 + $0x5d0] sm:$0xff]
        %v471 = vld [vmem:[%s280 + $0x5d8] sm:$0xff]
        %v472 = vld [vmem:[%s280 + $0x5e0] sm:$0xff]
        %v473 = vld [vmem:[%s280 + $0x5e8] sm:$0xff]
        %v474 = vld [vmem:[%s280 + $0x5f0] sm:$0xff]
        %v475 = vld [vmem:[%s280 + $0x5f8] sm:$0xff]
        %v476 = vld [vmem:[%s280 + $0x600] sm:$0xff]
        %v477 = vld [vmem:[%s280 + $0x608] sm:$0xff]
        %v478 = vld [vmem:[%s280 + $0x610] sm:$0xff]
        %v479 = vld [vmem:[%s280 + $0x618] sm:$0xff]
        %v480 = vld [vmem:[%s280 + $0x620] sm:$0xff]
        %v481 = vld [vmem:[%s280 + $0x628] sm:$0xff]
        %v482 = vld [vmem:[%s280 + $0x630] sm:$0xff]
        %v483 = vld [vmem:[%s280 + $0x638] sm:$0xff]
        %v484 = vld [vmem:[%s280 + $0x640] sm:$0xff]
        %v485 = vld [vmem:[%s280 + $0x648] sm:$0xff]
        %v486 = vld [vmem:[%s280 + $0x650] sm:$0xff]
        %v487 = vld [vmem:[%s280 + $0x658] sm:$0xff]
        %v488 = vld [vmem:[%s280 + $0x660] sm:$0xff]
        %v489 = vld [vmem:[%s280 + $0x668] sm:$0xff]
        %v490 = vld [vmem:[%s280 + $0x670] sm:$0xff]
        %v491 = vld [vmem:[%s280 + $0x678] sm:$0xff]
        %v492 = vld [vmem:[%s280 + $0x680] sm:$0xff]
        %v493 = vld [vmem:[%s280 + $0x688] sm:$0xff]
        %v494 = vld [vmem:[%s280 + $0x690] sm:$0xff]
        %v495 = vld [vmem:[%s280 + $0x698] sm:$0xff]
        %v496 = vld [vmem:[%s280 + $0x6a0] sm:$0xff]
        %v497 = vld [vmem:[%s280 + $0x6a8] sm:$0xff]
        %v498 = vld [vmem:[%s280 + $0x6b0] sm:$0xff]
        %v499 = vld [vmem:[%s280 + $0x6b8] sm:$0xff]
        %v500 = vld [vmem:[%s280 + $0x6c0] sm:$0xff]
        %v501 = vld [vmem:[%s280 + $0x6c8] sm:$0xff]
        %v502 = vld [vmem:[%s280 + $0x6d0] sm:$0xff]
        %v503 = vld [vmem:[%s280 + $0x6d8] sm:$0xff]
        %v504 = vld [vmem:[%s280 + $0x6e0] sm:$0xff]
        %v505 = vld [vmem:[%s280 + $0x6e8] sm:$0xff]
        %v506 = vld [vmem:[%s280 + $0x6f0] sm:$0xff]
        %v507 = vld [vmem:[%s280 + $0x6f8] sm:$0xff]
        %v508 = vpack.c.bf16 %v291, %v284
        %v509 = vpack.c.bf16 %v292, %v285
        %v510 = vpack.c.bf16 %v293, %v286
        %v511 = vpack.c.bf16 %v294, %v287
        %v512 = vpack.c.bf16 %v295, %v288
        %v513 = vpack.c.bf16 %v296, %v289
        %v514 = vpack.c.bf16 %v297, %v290
        %v515 = vpack.c.bf16 %v305, %v298
        %v516 = vpack.c.bf16 %v306, %v299
        %v517 = vpack.c.bf16 %v307, %v300
        %v518 = vpack.c.bf16 %v308, %v301
        %v519 = vpack.c.bf16 %v309, %v302
        %v520 = vpack.c.bf16 %v310, %v303
        %v521 = vpack.c.bf16 %v311, %v304
        %v522 = vpack.c.bf16 %v319, %v312
        %v523 = vpack.c.bf16 %v320, %v313
        %v524 = vpack.c.bf16 %v321, %v314
        %v525 = vpack.c.bf16 %v322, %v315
        %v526 = vpack.c.bf16 %v323, %v316
        %v527 = vpack.c.bf16 %v324, %v317
        %v528 = vpack.c.bf16 %v325, %v318
        %v529 = vpack.c.bf16 %v333, %v326
        %v530 = vpack.c.bf16 %v334, %v327
        %v531 = vpack.c.bf16 %v335, %v328
        %v532 = vpack.c.bf16 %v336, %v329
        %v533 = vpack.c.bf16 %v337, %v330
        %v534 = vpack.c.bf16 %v338, %v331
        %v535 = vpack.c.bf16 %v339, %v332
        %v536 = vpack.c.bf16 %v347, %v340
        %v537 = vpack.c.bf16 %v348, %v341
        %v538 = vpack.c.bf16 %v349, %v342
        %v539 = vpack.c.bf16 %v350, %v343
        %v540 = vpack.c.bf16 %v351, %v344
        %v541 = vpack.c.bf16 %v352, %v345
        %v542 = vpack.c.bf16 %v353, %v346
        %v543 = vpack.c.bf16 %v361, %v354
        %v544 = vpack.c.bf16 %v362, %v355
        %v545 = vpack.c.bf16 %v363, %v356
        %v546 = vpack.c.bf16 %v364, %v357
        %v547 = vpack.c.bf16 %v365, %v358
        %v548 = vpack.c.bf16 %v366, %v359
        %v549 = vpack.c.bf16 %v367, %v360
        %v550 = vpack.c.bf16 %v375, %v368
        %v551 = vpack.c.bf16 %v376, %v369
        %v552 = vpack.c.bf16 %v377, %v370
        %v553 = vpack.c.bf16 %v378, %v371
        %v554 = vpack.c.bf16 %v379, %v372
        %v555 = vpack.c.bf16 %v380, %v373
        %v556 = vpack.c.bf16 %v381, %v374
        %v557 = vpack.c.bf16 %v389, %v382
        %v558 = vpack.c.bf16 %v390, %v383
        %v559 = vpack.c.bf16 %v391, %v384
        %v560 = vpack.c.bf16 %v392, %v385
        %v561 = vpack.c.bf16 %v393, %v386
        %v562 = vpack.c.bf16 %v394, %v387
        %v563 = vpack.c.bf16 %v395, %v388
        %v564 = vpack.c.bf16 %v403, %v396
        %v565 = vpack.c.bf16 %v404, %v397
        %v566 = vpack.c.bf16 %v405, %v398
        %v567 = vpack.c.bf16 %v406, %v399
        %v568 = vpack.c.bf16 %v407, %v400
        %v569 = vpack.c.bf16 %v408, %v401
        %v570 = vpack.c.bf16 %v409, %v402
        %v571 = vpack.c.bf16 %v417, %v410
        %v572 = vpack.c.bf16 %v418, %v411
        %v573 = vpack.c.bf16 %v419, %v412
        %v574 = vpack.c.bf16 %v420, %v413
        %v575 = vpack.c.bf16 %v421, %v414
        %v576 = vpack.c.bf16 %v422, %v415
        %v577 = vpack.c.bf16 %v423, %v416
        %v578 = vpack.c.bf16 %v431, %v424
        %v579 = vpack.c.bf16 %v432, %v425
        %v580 = vpack.c.bf16 %v433, %v426
        %v581 = vpack.c.bf16 %v434, %v427
        %v582 = vpack.c.bf16 %v435, %v428
        %v583 = vpack.c.bf16 %v436, %v429
        %v584 = vpack.c.bf16 %v437, %v430
        %v585 = vpack.c.bf16 %v445, %v438
        %v586 = vpack.c.bf16 %v446, %v439
        %v587 = vpack.c.bf16 %v447, %v440
        %v588 = vpack.c.bf16 %v448, %v441
        %v589 = vpack.c.bf16 %v449, %v442
        %v590 = vpack.c.bf16 %v450, %v443
        %v591 = vpack.c.bf16 %v451, %v444
        %v592 = vpack.c.bf16 %v459, %v452
        %v593 = vpack.c.bf16 %v460, %v453
        %v594 = vpack.c.bf16 %v461, %v454
        %v595 = vpack.c.bf16 %v462, %v455
        %v596 = vpack.c.bf16 %v463, %v456
        %v597 = vpack.c.bf16 %v464, %v457
        %v598 = vpack.c.bf16 %v465, %v458
        %v599 = vpack.c.bf16 %v473, %v466
        %v600 = vpack.c.bf16 %v474, %v467
        %v601 = vpack.c.bf16 %v475, %v468
        %v602 = vpack.c.bf16 %v476, %v469
        %v603 = vpack.c.bf16 %v477, %v470
        %v604 = vpack.c.bf16 %v478, %v471
        %v605 = vpack.c.bf16 %v479, %v472
        %v606 = vpack.c.bf16 %v487, %v480
        %v607 = vpack.c.bf16 %v488, %v481
        %v608 = vpack.c.bf16 %v489, %v482
        %v609 = vpack.c.bf16 %v490, %v483
        %v610 = vpack.c.bf16 %v491, %v484
        %v611 = vpack.c.bf16 %v492, %v485
        %v612 = vpack.c.bf16 %v493, %v486
        %v613 = vpack.c.bf16 %v501, %v494
        %v614 = vpack.c.bf16 %v502, %v495
        %v615 = vpack.c.bf16 %v503, %v496
        %v616 = vpack.c.bf16 %v504, %v497
        %v617 = vpack.c.bf16 %v505, %v498
        %v618 = vpack.c.bf16 %v506, %v499
        %v619 = vpack.c.bf16 %v507, %v500
        %v620 = vld [vmem:[%s1] sm:$0xff]
        %v621 = vld [vmem:[%s1 + $0x8] sm:$0xff]
        %v622 = vld [vmem:[%s1 + $0x10] sm:$0xff]
        %v623 = vld [vmem:[%s1 + $0x18] sm:$0xff]
        %v624 = vld [vmem:[%s1 + $0x20] sm:$0xff]
        %v625 = vld [vmem:[%s1 + $0x28] sm:$0xff]
        %v626 = vld [vmem:[%s1 + $0x30] sm:$0xff]
        %v627 = vld [vmem:[%s1 + $0x38] sm:$0xff]
        %v628 = vld [vmem:[%s1 + $0x40] sm:$0xff]
        %v629 = vld [vmem:[%s1 + $0x48] sm:$0xff]
        %v630 = vld [vmem:[%s1 + $0x50] sm:$0xff]
        %v631 = vld [vmem:[%s1 + $0x58] sm:$0xff]
        %v632 = vld [vmem:[%s1 + $0x60] sm:$0xff]
        %v633 = vld [vmem:[%s1 + $0x68] sm:$0xff]
        %v634 = vld [vmem:[%s1 + $0x70] sm:$0xff]
        %v635 = vld [vmem:[%s1 + $0x78] sm:$0xff]
        %v636 = vld [vmem:[%s1 + $0x80] sm:$0xff]
        %v637 = vld [vmem:[%s1 + $0x88] sm:$0xff]
        %v638 = vld [vmem:[%s1 + $0x90] sm:$0xff]
        %v639 = vld [vmem:[%s1 + $0x98] sm:$0xff]
        %v640 = vld [vmem:[%s1 + $0xa0] sm:$0xff]
        %v641 = vld [vmem:[%s1 + $0xa8] sm:$0xff]
        %v642 = vld [vmem:[%s1 + $0xb0] sm:$0xff]
        %v643 = vld [vmem:[%s1 + $0xb8] sm:$0xff]
        %v644 = vld [vmem:[%s1 + $0xc0] sm:$0xff]
        %v645 = vld [vmem:[%s1 + $0xc8] sm:$0xff]
        %v646 = vld [vmem:[%s1 + $0xd0] sm:$0xff]
        %v647 = vld [vmem:[%s1 + $0xd8] sm:$0xff]
        %v648 = vld [vmem:[%s1 + $0xe0] sm:$0xff]
        %v649 = vld [vmem:[%s1 + $0xe8] sm:$0xff]
        %v650 = vld [vmem:[%s1 + $0xf0] sm:$0xff]
        %v651 = vld [vmem:[%s1 + $0xf8] sm:$0xff]
        %v652 = vld [vmem:[%s1 + $0x100] sm:$0xff]
        %v653 = vld [vmem:[%s1 + $0x108] sm:$0xff]
        %v654 = vld [vmem:[%s1 + $0x110] sm:$0xff]
        %v655 = vld [vmem:[%s1 + $0x118] sm:$0xff]
        %v656 = vld [vmem:[%s1 + $0x120] sm:$0xff]
        %v657 = vld [vmem:[%s1 + $0x128] sm:$0xff]
        %v658 = vld [vmem:[%s1 + $0x130] sm:$0xff]
        %v659 = vld [vmem:[%s1 + $0x138] sm:$0xff]
        %v660 = vld [vmem:[%s1 + $0x140] sm:$0xff]
        %v661 = vld [vmem:[%s1 + $0x148] sm:$0xff]
        %v662 = vld [vmem:[%s1 + $0x150] sm:$0xff]
        %v663 = vld [vmem:[%s1 + $0x158] sm:$0xff]
        %v664 = vld [vmem:[%s1 + $0x160] sm:$0xff]
        %v665 = vld [vmem:[%s1 + $0x168] sm:$0xff]
        %v666 = vld [vmem:[%s1 + $0x170] sm:$0xff]
        %v667 = vld [vmem:[%s1 + $0x178] sm:$0xff]
        %v668 = vld [vmem:[%s1 + $0x180] sm:$0xff]
        %v669 = vld [vmem:[%s1 + $0x188] sm:$0xff]
        %v670 = vld [vmem:[%s1 + $0x190] sm:$0xff]
        %v671 = vld [vmem:[%s1 + $0x198] sm:$0xff]
        %v672 = vld [vmem:[%s1 + $0x1a0] sm:$0xff]
        %v673 = vld [vmem:[%s1 + $0x1a8] sm:$0xff]
        %v674 = vld [vmem:[%s1 + $0x1b0] sm:$0xff]
        %v675 = vld [vmem:[%s1 + $0x1b8] sm:$0xff]
        %v676 = vld [vmem:[%s1 + $0x1c0] sm:$0xff]
        %v677 = vld [vmem:[%s1 + $0x1c8] sm:$0xff]
        %v678 = vld [vmem:[%s1 + $0x1d0] sm:$0xff]
        %v679 = vld [vmem:[%s1 + $0x1d8] sm:$0xff]
        %v680 = vld [vmem:[%s1 + $0x1e0] sm:$0xff]
        %v681 = vld [vmem:[%s1 + $0x1e8] sm:$0xff]
        %v682 = vld [vmem:[%s1 + $0x1f0] sm:$0xff]
        %v683 = vld [vmem:[%s1 + $0x1f8] sm:$0xff]
        %v684 = vld [vmem:[%s1 + $0x200] sm:$0xff]
        %v685 = vld [vmem:[%s1 + $0x208] sm:$0xff]
        %v686 = vld [vmem:[%s1 + $0x210] sm:$0xff]
        %v687 = vld [vmem:[%s1 + $0x218] sm:$0xff]
        %v688 = vld [vmem:[%s1 + $0x220] sm:$0xff]
        %v689 = vld [vmem:[%s1 + $0x228] sm:$0xff]
        %v690 = vld [vmem:[%s1 + $0x230] sm:$0xff]
        %v691 = vld [vmem:[%s1 + $0x238] sm:$0xff]
        %v692 = vld [vmem:[%s1 + $0x240] sm:$0xff]
        %v693 = vld [vmem:[%s1 + $0x248] sm:$0xff]
        %v694 = vld [vmem:[%s1 + $0x250] sm:$0xff]
        %v695 = vld [vmem:[%s1 + $0x258] sm:$0xff]
        %v696 = vld [vmem:[%s1 + $0x260] sm:$0xff]
        %v697 = vld [vmem:[%s1 + $0x268] sm:$0xff]
        %v698 = vld [vmem:[%s1 + $0x270] sm:$0xff]
        %v699 = vld [vmem:[%s1 + $0x278] sm:$0xff]
        %v700 = vld [vmem:[%s1 + $0x280] sm:$0xff]
        %v701 = vld [vmem:[%s1 + $0x288] sm:$0xff]
        %v702 = vld [vmem:[%s1 + $0x290] sm:$0xff]
        %v703 = vld [vmem:[%s1 + $0x298] sm:$0xff]
        %v704 = vld [vmem:[%s1 + $0x2a0] sm:$0xff]
        %v705 = vld [vmem:[%s1 + $0x2a8] sm:$0xff]
        %v706 = vld [vmem:[%s1 + $0x2b0] sm:$0xff]
        %v707 = vld [vmem:[%s1 + $0x2b8] sm:$0xff]
        %v708 = vld [vmem:[%s1 + $0x2c0] sm:$0xff]
        %v709 = vld [vmem:[%s1 + $0x2c8] sm:$0xff]
        %v710 = vld [vmem:[%s1 + $0x2d0] sm:$0xff]
        %v711 = vld [vmem:[%s1 + $0x2d8] sm:$0xff]
        %v712 = vld [vmem:[%s1 + $0x2e0] sm:$0xff]
        %v713 = vld [vmem:[%s1 + $0x2e8] sm:$0xff]
        %v714 = vld [vmem:[%s1 + $0x2f0] sm:$0xff]
        %v715 = vld [vmem:[%s1 + $0x2f8] sm:$0xff]
        %v716 = vld [vmem:[%s1 + $0x300] sm:$0xff]
        %v717 = vld [vmem:[%s1 + $0x308] sm:$0xff]
        %v718 = vld [vmem:[%s2] sm:$0x3]
        %v720 = vlaneseq
        %v721 = vshrl.u32 %v720, 7
        %v722 = vsub.s32 0, %v721
        %v723 = vrot.slane %v718, %v722
        %v724 = vlaneseq
        %v725 = vshrl.u32 %v724, 7
        %v726 = vsub.s32 1, %v725
        %v727 = vrot.slane %v718, %v726
        %v828 = vunpack.c.l.b16 %v620
        %v829 = vunpack.c.h.b16 %v620
        %v830 = vunpack.c.l.b16 %v621
        %v831 = vunpack.c.h.b16 %v621
        %v832 = vunpack.c.l.b16 %v622
        %v833 = vunpack.c.h.b16 %v622
        %v834 = vunpack.c.l.b16 %v623
        %v835 = vunpack.c.h.b16 %v623
        %v836 = vunpack.c.l.b16 %v624
        %v837 = vunpack.c.h.b16 %v624
        %v838 = vunpack.c.l.b16 %v625
        %v839 = vunpack.c.h.b16 %v625
        %v840 = vunpack.c.l.b16 %v626
        %v841 = vunpack.c.h.b16 %v626
        %v842 = vunpack.c.l.b16 %v627
        %v843 = vunpack.c.h.b16 %v627
        %v844 = vunpack.c.l.b16 %v628
        %v845 = vunpack.c.h.b16 %v628
        %v846 = vunpack.c.l.b16 %v629
        %v847 = vunpack.c.h.b16 %v629
        %v848 = vunpack.c.l.b16 %v630
        %v849 = vunpack.c.h.b16 %v630
        %v850 = vunpack.c.l.b16 %v631
        %v851 = vunpack.c.h.b16 %v631
        %v852 = vunpack.c.l.b16 %v632
        %v853 = vunpack.c.h.b16 %v632
        %v854 = vunpack.c.l.b16 %v633
        %v855 = vunpack.c.h.b16 %v633
        %v856 = vunpack.c.l.b16 %v634
        %v857 = vunpack.c.h.b16 %v634
        %v858 = vunpack.c.l.b16 %v635
        %v859 = vunpack.c.h.b16 %v635
        %v860 = vunpack.c.l.b16 %v636
        %v861 = vunpack.c.h.b16 %v636
        %v862 = vunpack.c.l.b16 %v637
        %v863 = vunpack.c.h.b16 %v637
        %v864 = vunpack.c.l.b16 %v638
        %v865 = vunpack.c.h.b16 %v638
        %v866 = vunpack.c.l.b16 %v639
        %v867 = vunpack.c.h.b16 %v639
        %v868 = vunpack.c.l.b16 %v640
        %v869 = vunpack.c.h.b16 %v640
        %v870 = vunpack.c.l.b16 %v641
        %v871 = vunpack.c.h.b16 %v641
        %v872 = vunpack.c.l.b16 %v642
        %v873 = vunpack.c.h.b16 %v642
        %v874 = vunpack.c.l.b16 %v643
        %v875 = vunpack.c.h.b16 %v643
        %v876 = vunpack.c.l.b16 %v644
        %v877 = vunpack.c.h.b16 %v644
        %v878 = vunpack.c.l.b16 %v645
        %v879 = vunpack.c.h.b16 %v645
        %v880 = vunpack.c.l.b16 %v646
        %v881 = vunpack.c.h.b16 %v646
        %v882 = vunpack.c.l.b16 %v647
        %v883 = vunpack.c.h.b16 %v647
        %v884 = vunpack.c.l.b16 %v648
        %v885 = vunpack.c.h.b16 %v648
        %v886 = vunpack.c.l.b16 %v649
        %v887 = vunpack.c.h.b16 %v649
        %v888 = vunpack.c.l.b16 %v650
        %v889 = vunpack.c.h.b16 %v650
        %v890 = vunpack.c.l.b16 %v651
        %v891 = vunpack.c.h.b16 %v651
        %v892 = vunpack.c.l.b16 %v652
        %v893 = vunpack.c.h.b16 %v652
        %v894 = vunpack.c.l.b16 %v653
        %v895 = vunpack.c.h.b16 %v653
        %v896 = vunpack.c.l.b16 %v654
        %v897 = vunpack.c.h.b16 %v654
        %v898 = vunpack.c.l.b16 %v655
        %v899 = vunpack.c.h.b16 %v655
        %v900 = vunpack.c.l.b16 %v656
        %v901 = vunpack.c.h.b16 %v656
        %v902 = vunpack.c.l.b16 %v657
        %v903 = vunpack.c.h.b16 %v657
        %v904 = vunpack.c.l.b16 %v658
        %v905 = vunpack.c.h.b16 %v658
        %v906 = vunpack.c.l.b16 %v659
        %v907 = vunpack.c.h.b16 %v659
        %v908 = vunpack.c.l.b16 %v660
        %v909 = vunpack.c.h.b16 %v660
        %v910 = vunpack.c.l.b16 %v661
        %v911 = vunpack.c.h.b16 %v661
        %v912 = vunpack.c.l.b16 %v662
        %v913 = vunpack.c.h.b16 %v662
        %v914 = vunpack.c.l.b16 %v663
        %v915 = vunpack.c.h.b16 %v663
        %v916 = vunpack.c.l.b16 %v664
        %v917 = vunpack.c.h.b16 %v664
        %v918 = vunpack.c.l.b16 %v665
        %v919 = vunpack.c.h.b16 %v665
        %v920 = vunpack.c.l.b16 %v666
        %v921 = vunpack.c.h.b16 %v666
        %v922 = vunpack.c.l.b16 %v667
        %v923 = vunpack.c.h.b16 %v667
        %v924 = vunpack.c.l.b16 %v668
        %v925 = vunpack.c.h.b16 %v668
        %v926 = vunpack.c.l.b16 %v669
        %v927 = vunpack.c.h.b16 %v669
        %v928 = vunpack.c.l.b16 %v670
        %v929 = vunpack.c.h.b16 %v670
        %v930 = vunpack.c.l.b16 %v671
        %v931 = vunpack.c.h.b16 %v671
        %v932 = vunpack.c.l.b16 %v672
        %v933 = vunpack.c.h.b16 %v672
        %v934 = vunpack.c.l.b16 %v673
        %v935 = vunpack.c.h.b16 %v673
        %v936 = vunpack.c.l.b16 %v674
        %v937 = vunpack.c.h.b16 %v674
        %v938 = vunpack.c.l.b16 %v675
        %v939 = vunpack.c.h.b16 %v675
        %v940 = vunpack.c.l.b16 %v676
        %v941 = vunpack.c.h.b16 %v676
        %v942 = vunpack.c.l.b16 %v677
        %v943 = vunpack.c.h.b16 %v677
        %v944 = vunpack.c.l.b16 %v678
        %v945 = vunpack.c.h.b16 %v678
        %v946 = vunpack.c.l.b16 %v679
        %v947 = vunpack.c.h.b16 %v679
        %v948 = vunpack.c.l.b16 %v680
        %v949 = vunpack.c.h.b16 %v680
        %v950 = vunpack.c.l.b16 %v681
        %v951 = vunpack.c.h.b16 %v681
        %v952 = vunpack.c.l.b16 %v682
        %v953 = vunpack.c.h.b16 %v682
        %v954 = vunpack.c.l.b16 %v683
        %v955 = vunpack.c.h.b16 %v683
        %v956 = vunpack.c.l.b16 %v684
        %v957 = vunpack.c.h.b16 %v684
        %v958 = vunpack.c.l.b16 %v685
        %v959 = vunpack.c.h.b16 %v685
        %v960 = vunpack.c.l.b16 %v686
        %v961 = vunpack.c.h.b16 %v686
        %v962 = vunpack.c.l.b16 %v687
        %v963 = vunpack.c.h.b16 %v687
        %v964 = vunpack.c.l.b16 %v688
        %v965 = vunpack.c.h.b16 %v688
        %v966 = vunpack.c.l.b16 %v689
        %v967 = vunpack.c.h.b16 %v689
        %v968 = vunpack.c.l.b16 %v690
        %v969 = vunpack.c.h.b16 %v690
        %v970 = vunpack.c.l.b16 %v691
        %v971 = vunpack.c.h.b16 %v691
        %v972 = vunpack.c.l.b16 %v692
        %v973 = vunpack.c.h.b16 %v692
        %v974 = vunpack.c.l.b16 %v693
        %v975 = vunpack.c.h.b16 %v693
        %v976 = vunpack.c.l.b16 %v694
        %v977 = vunpack.c.h.b16 %v694
        %v978 = vunpack.c.l.b16 %v695
        %v979 = vunpack.c.h.b16 %v695
        %v980 = vunpack.c.l.b16 %v696
        %v981 = vunpack.c.h.b16 %v696
        %v982 = vunpack.c.l.b16 %v697
        %v983 = vunpack.c.h.b16 %v697
        %v984 = vunpack.c.l.b16 %v698
        %v985 = vunpack.c.h.b16 %v698
        %v986 = vunpack.c.l.b16 %v699
        %v987 = vunpack.c.h.b16 %v699
        %v988 = vunpack.c.l.b16 %v700
        %v989 = vunpack.c.h.b16 %v700
        %v990 = vunpack.c.l.b16 %v701
        %v991 = vunpack.c.h.b16 %v701
        %v992 = vunpack.c.l.b16 %v702
        %v993 = vunpack.c.h.b16 %v702
        %v994 = vunpack.c.l.b16 %v703
        %v995 = vunpack.c.h.b16 %v703
        %v996 = vunpack.c.l.b16 %v704
        %v997 = vunpack.c.h.b16 %v704
        %v998 = vunpack.c.l.b16 %v705
        %v999 = vunpack.c.h.b16 %v705
        %v1000 = vunpack.c.l.b16 %v706
        %v1001 = vunpack.c.h.b16 %v706
        %v1002 = vunpack.c.l.b16 %v707
        %v1003 = vunpack.c.h.b16 %v707
        %v1004 = vunpack.c.l.b16 %v708
        %v1005 = vunpack.c.h.b16 %v708
        %v1006 = vunpack.c.l.b16 %v709
        %v1007 = vunpack.c.h.b16 %v709
        %v1008 = vunpack.c.l.b16 %v710
        %v1009 = vunpack.c.h.b16 %v710
        %v1010 = vunpack.c.l.b16 %v711
        %v1011 = vunpack.c.h.b16 %v711
        %v1012 = vunpack.c.l.b16 %v712
        %v1013 = vunpack.c.h.b16 %v712
        %v1014 = vunpack.c.l.b16 %v713
        %v1015 = vunpack.c.h.b16 %v713
        %v1016 = vunpack.c.l.b16 %v714
        %v1017 = vunpack.c.h.b16 %v714
        %v1018 = vunpack.c.l.b16 %v715
        %v1019 = vunpack.c.h.b16 %v715
        %v1020 = vunpack.c.l.b16 %v716
        %v1021 = vunpack.c.h.b16 %v716
        %v1022 = vunpack.c.l.b16 %v717
        %v1023 = vunpack.c.h.b16 %v717
        %v1024 = vpack.c.b16 %v830, %v828
        %v1025 = vpack.c.b16 %v831, %v829
        %v1026 = vpack.c.b16 %v834, %v832
        %v1027 = vpack.c.b16 %v835, %v833
        %v1028 = vpack.c.b16 %v838, %v836
        %v1029 = vpack.c.b16 %v839, %v837
        %v1030 = vpack.c.b16 %v842, %v840
        %v1031 = vpack.c.b16 %v843, %v841
        %v1032 = vpack.c.b16 %v846, %v844
        %v1033 = vpack.c.b16 %v847, %v845
        %v1034 = vpack.c.b16 %v850, %v848
        %v1035 = vpack.c.b16 %v851, %v849
        %v1036 = vpack.c.b16 %v854, %v852
        %v1037 = vpack.c.b16 %v855, %v853
        %v1038 = vpack.c.b16 %v858, %v856
        %v1039 = vpack.c.b16 %v859, %v857
        %v1040 = vpack.c.b16 %v862, %v860
        %v1041 = vpack.c.b16 %v863, %v861
        %v1042 = vpack.c.b16 %v866, %v864
        %v1043 = vpack.c.b16 %v867, %v865
        %v1044 = vpack.c.b16 %v870, %v868
        %v1045 = vpack.c.b16 %v871, %v869
        %v1046 = vpack.c.b16 %v874, %v872
        %v1047 = vpack.c.b16 %v875, %v873
        %v1048 = vpack.c.b16 %v878, %v876
        %v1049 = vpack.c.b16 %v879, %v877
        %v1050 = vpack.c.b16 %v882, %v880
        %v1051 = vpack.c.b16 %v883, %v881
        %v1052 = vpack.c.b16 %v886, %v884
        %v1053 = vpack.c.b16 %v887, %v885
        %v1054 = vpack.c.b16 %v890, %v888
        %v1055 = vpack.c.b16 %v891, %v889
        %v1056 = vpack.c.b16 %v894, %v892
        %v1057 = vpack.c.b16 %v895, %v893
        %v1058 = vpack.c.b16 %v898, %v896
        %v1059 = vpack.c.b16 %v899, %v897
        %v1060 = vpack.c.b16 %v902, %v900
        %v1061 = vpack.c.b16 %v903, %v901
        %v1062 = vpack.c.b16 %v906, %v904
        %v1063 = vpack.c.b16 %v907, %v905
        %v1064 = vpack.c.b16 %v910, %v908
        %v1065 = vpack.c.b16 %v911, %v909
        %v1066 = vpack.c.b16 %v914, %v912
        %v1067 = vpack.c.b16 %v915, %v913
        %v1068 = vpack.c.b16 %v918, %v916
        %v1069 = vpack.c.b16 %v919, %v917
        %v1070 = vpack.c.b16 %v922, %v920
        %v1071 = vpack.c.b16 %v923, %v921
        %v1072 = vpack.c.b16 %v926, %v924
        %v1073 = vpack.c.b16 %v927, %v925
        %v1074 = vpack.c.b16 %v930, %v928
        %v1075 = vpack.c.b16 %v931, %v929
        %v1076 = vpack.c.b16 %v934, %v932
        %v1077 = vpack.c.b16 %v935, %v933
        %v1078 = vpack.c.b16 %v938, %v936
        %v1079 = vpack.c.b16 %v939, %v937
        %v1080 = vpack.c.b16 %v942, %v940
        %v1081 = vpack.c.b16 %v943, %v941
        %v1082 = vpack.c.b16 %v946, %v944
        %v1083 = vpack.c.b16 %v947, %v945
        %v1084 = vpack.c.b16 %v950, %v948
        %v1085 = vpack.c.b16 %v951, %v949
        %v1086 = vpack.c.b16 %v954, %v952
        %v1087 = vpack.c.b16 %v955, %v953
        %v1088 = vpack.c.b16 %v958, %v956
        %v1089 = vpack.c.b16 %v959, %v957
        %v1090 = vpack.c.b16 %v962, %v960
        %v1091 = vpack.c.b16 %v963, %v961
        %v1092 = vpack.c.b16 %v966, %v964
        %v1093 = vpack.c.b16 %v967, %v965
        %v1094 = vpack.c.b16 %v970, %v968
        %v1095 = vpack.c.b16 %v971, %v969
        %v1096 = vpack.c.b16 %v974, %v972
        %v1097 = vpack.c.b16 %v975, %v973
        %v1098 = vpack.c.b16 %v978, %v976
        %v1099 = vpack.c.b16 %v979, %v977
        %v1100 = vpack.c.b16 %v982, %v980
        %v1101 = vpack.c.b16 %v983, %v981
        %v1102 = vpack.c.b16 %v986, %v984
        %v1103 = vpack.c.b16 %v987, %v985
        %v1104 = vpack.c.b16 %v990, %v988
        %v1105 = vpack.c.b16 %v991, %v989
        %v1106 = vpack.c.b16 %v994, %v992
        %v1107 = vpack.c.b16 %v995, %v993
        %v1108 = vpack.c.b16 %v998, %v996
        %v1109 = vpack.c.b16 %v999, %v997
        %v1110 = vpack.c.b16 %v1002, %v1000
        %v1111 = vpack.c.b16 %v1003, %v1001
        %v1112 = vpack.c.b16 %v1006, %v1004
        %v1113 = vpack.c.b16 %v1007, %v1005
        %v1114 = vpack.c.b16 %v1010, %v1008
        %v1115 = vpack.c.b16 %v1011, %v1009
        %v1116 = vpack.c.b16 %v1014, %v1012
        %v1117 = vpack.c.b16 %v1015, %v1013
        %v1118 = vpack.c.b16 %v1018, %v1016
        %v1119 = vpack.c.b16 %v1019, %v1017
        %v1120 = vpack.c.b16 %v1022, %v1020
        %v1121 = vpack.c.b16 %v1023, %v1021
        %vm1220 = vcmask 130048
        %v1222 = vsel %vm1220, %v514, 0
        %v1225 = vsel %vm1220, %v521, 0
        %v1228 = vsel %vm1220, %v528, 0
        %v1231 = vsel %vm1220, %v535, 0
        %v1234 = vsel %vm1220, %v542, 0
        %v1237 = vsel %vm1220, %v549, 0
        %v1240 = vsel %vm1220, %v556, 0
        %v1243 = vsel %vm1220, %v563, 0
        %v1246 = vsel %vm1220, %v570, 0
        %v1249 = vsel %vm1220, %v577, 0
        %v1252 = vsel %vm1220, %v584, 0
        %v1255 = vsel %vm1220, %v591, 0
        %v1258 = vsel %vm1220, %v598, 0
        %v1261 = vsel %vm1220, %v605, 0
        %v1264 = vsel %vm1220, %v612, 0
        %v1267 = vsel %vm1220, %v619, 0
        %1269 = vmatprep.subr.bf16.mxu0 %v1025
        %1270 = vmatpush1.bf16.msra.mxu0 %v1024
        %1271 = vmatprep.subr.bf16.mxu0 %v1027
        %1272 = vmatpush1.bf16.msra.mxu0 %v1026
        %1273 = vmatprep.subr.bf16.mxu0 %v1029
        %1274 = vmatpush1.bf16.msra.mxu0 %v1028
        %1275 = vmatprep.subr.bf16.mxu0 %v1031
        %1276 = vmatpush1.bf16.msra.mxu0 %v1030
        %1277 = vmatprep.subr.bf16.mxu0 %v1033
        %1278 = vmatpush1.bf16.msra.mxu0 %v1032
        %1279 = vmatprep.subr.bf16.mxu0 %v1035
        %1280 = vmatpush1.bf16.msra.mxu0 %v1034
        %1281 = vmatprep.subr.bf16.mxu0 %v1037
        %1282 = vmatpush1.bf16.msra.mxu0 %v1036
        %1283 = vmatprep.subr.bf16.mxu0 %v1039
        %1284 = vmatpush1.bf16.msra.mxu0 %v1038
        %1285 = vmatprep.subr.bf16.mxu0 %v1041
        %1286 = vmatpush1.bf16.msra.mxu0 %v1040
        %1287 = vmatprep.subr.bf16.mxu0 %v1043
        %1288 = vmatpush1.bf16.msra.mxu0 %v1042
        %1289 = vmatprep.subr.bf16.mxu0 %v1045
        %1290 = vmatpush1.bf16.msra.mxu0 %v1044
        %1291 = vmatprep.subr.bf16.mxu0 %v1047
        %1292 = vmatpush1.bf16.msra.mxu0 %v1046
        %1293 = vmatprep.subr.bf16.mxu0 %v1049
        %1294 = vmatpush1.bf16.msra.mxu0 %v1048
        %1295 = vmatprep.subr.bf16.mxu0 %v1051
        %1296 = vmatpush1.bf16.msra.mxu0 %v1050
        %1297 = vmatprep.subr.bf16.mxu0 %v1053
        %1298 = vmatpush1.bf16.msra.mxu0 %v1052
        %1299 = vmatprep.subr.bf16.mxu0 %v1055
        %1300 = vmatpush1.bf16.msra.mxu0 %v1054
        %1301 = vmatprep.mubr.bf16.mxu0 %v509
        %1302 = vmatmul.mubr.bf16.gmra.mrb[0].mxu0 %v508
        %v1303 = vpop.f32.mrb[0].mxu0
        %v1304 = vadd.f32 %v723, %v1303
        %v1305 = vpop.f32.mrb[0].mxu0
        %v1306 = vadd.f32 %v727, %v1305
        %v1307 = vpop.f32.mrb[0].mxu0
        %v1308 = vadd.f32 %v723, %v1307
        %v1309 = vpop.f32.mrb[0].mxu0
        %v1310 = vadd.f32 %v727, %v1309
        %1311 = vmatprep.mubr.bf16.mxu0 %v516
        %1312 = vmatmul.mubr.bf16.gmra.mrb[0].mxu0 %v515
        %v1313 = vpop.f32.mrb[0].mxu0
        %v1314 = vadd.f32 %v723, %v1313
        %v1315 = vpop.f32.mrb[0].mxu0
        %v1316 = vadd.f32 %v727, %v1315
        %v1317 = vpop.f32.mrb[0].mxu0
        %v1318 = vadd.f32 %v723, %v1317
        %v1319 = vpop.f32.mrb[0].mxu0
        %v1320 = vadd.f32 %v727, %v1319
        %1321 = vmatprep.mubr.bf16.mxu0 %v523
        %1322 = vmatmul.mubr.bf16.gmra.mrb[0].mxu0 %v522
        %v1323 = vpop.f32.mrb[0].mxu0
        %v1324 = vadd.f32 %v723, %v1323
        %v1325 = vpop.f32.mrb[0].mxu0
        %v1326 = vadd.f32 %v727, %v1325
        %v1327 = vpop.f32.mrb[0].mxu0
        %v1328 = vadd.f32 %v723, %v1327
        %v1329 = vpop.f32.mrb[0].mxu0
        %v1330 = vadd.f32 %v727, %v1329
        %1331 = vmatprep.mubr.bf16.mxu0 %v530
        %1332 = vmatmul.mubr.bf16.gmra.mrb[0].mxu0 %v529
        %v1333 = vpop.f32.mrb[0].mxu0
        %v1334 = vadd.f32 %v723, %v1333
        %v1335 = vpop.f32.mrb[0].mxu0
        %v1336 = vadd.f32 %v727, %v1335
        %v1337 = vpop.f32.mrb[0].mxu0
        %v1338 = vadd.f32 %v723, %v1337
        %v1339 = vpop.f32.mrb[0].mxu0
        %v1340 = vadd.f32 %v727, %v1339
        %1341 = vmatprep.mubr.bf16.mxu0 %v537
        %1342 = vmatmul.mubr.bf16.gmra.mrb[0].mxu0 %v536
        %v1343 = vpop.f32.mrb[0].mxu0
        %v1344 = vadd.f32 %v723, %v1343
        %v1345 = vpop.f32.mrb[0].mxu0
        %v1346 = vadd.f32 %v727, %v1345
        %v1347 = vpop.f32.mrb[0].mxu0
        %v1348 = vadd.f32 %v723, %v1347
        %v1349 = vpop.f32.mrb[0].mxu0
        %v1350 = vadd.f32 %v727, %v1349
        %1351 = vmatprep.mubr.bf16.mxu0 %v544
        %1352 = vmatmul.mubr.bf16.gmra.mrb[0].mxu0 %v543
        %v1353 = vpop.f32.mrb[0].mxu0
        %v1354 = vadd.f32 %v723, %v1353
        %v1355 = vpop.f32.mrb[0].mxu0
        %v1356 = vadd.f32 %v727, %v1355
        %v1357 = vpop.f32.mrb[0].mxu0
        %v1358 = vadd.f32 %v723, %v1357
        %v1359 = vpop.f32.mrb[0].mxu0
        %v1360 = vadd.f32 %v727, %v1359
        %1361 = vmatprep.mubr.bf16.mxu0 %v551
        %1362 = vmatmul.mubr.bf16.gmra.mrb[0].mxu0 %v550
        %v1363 = vpop.f32.mrb[0].mxu0
        %v1364 = vadd.f32 %v723, %v1363
        %v1365 = vpop.f32.mrb[0].mxu0
        %v1366 = vadd.f32 %v727, %v1365
        %v1367 = vpop.f32.mrb[0].mxu0
        %v1368 = vadd.f32 %v723, %v1367
        %v1369 = vpop.f32.mrb[0].mxu0
        %v1370 = vadd.f32 %v727, %v1369
        %1371 = vmatprep.mubr.bf16.mxu0 %v558
        %1372 = vmatmul.mubr.bf16.gmra.mrb[0].mxu0 %v557
        %v1373 = vpop.f32.mrb[0].mxu0
        %v1374 = vadd.f32 %v723, %v1373
        %v1375 = vpop.f32.mrb[0].mxu0
        %v1376 = vadd.f32 %v727, %v1375
        %v1377 = vpop.f32.mrb[0].mxu0
        %v1378 = vadd.f32 %v723, %v1377
        %v1379 = vpop.f32.mrb[0].mxu0
        %v1380 = vadd.f32 %v727, %v1379
        %1381 = vmatprep.mubr.bf16.mxu0 %v565
        %1382 = vmatmul.mubr.bf16.gmra.mrb[0].mxu0 %v564
        %v1383 = vpop.f32.mrb[0].mxu0
        %v1384 = vadd.f32 %v723, %v1383
        %v1385 = vpop.f32.mrb[0].mxu0
        %v1386 = vadd.f32 %v727, %v1385
        %v1387 = vpop.f32.mrb[0].mxu0
        %v1388 = vadd.f32 %v723, %v1387
        %v1389 = vpop.f32.mrb[0].mxu0
        %v1390 = vadd.f32 %v727, %v1389
        %1391 = vmatprep.mubr.bf16.mxu0 %v572
        %1392 = vmatmul.mubr.bf16.gmra.mrb[0].mxu0 %v571
        %v1393 = vpop.f32.mrb[0].mxu0
        %v1394 = vadd.f32 %v723, %v1393
        %v1395 = vpop.f32.mrb[0].mxu0
        %v1396 = vadd.f32 %v727, %v1395
        %v1397 = vpop.f32.mrb[0].mxu0
        %v1398 = vadd.f32 %v723, %v1397
        %v1399 = vpop.f32.mrb[0].mxu0
        %v1400 = vadd.f32 %v727, %v1399
        %1401 = vmatprep.mubr.bf16.mxu0 %v579
        %1402 = vmatmul.mubr.bf16.gmra.mrb[0].mxu0 %v578
        %v1403 = vpop.f32.mrb[0].mxu0
        %v1404 = vadd.f32 %v723, %v1403
        %v1405 = vpop.f32.mrb[0].mxu0
        %v1406 = vadd.f32 %v727, %v1405
        %v1407 = vpop.f32.mrb[0].mxu0
        %v1408 = vadd.f32 %v723, %v1407
        %v1409 = vpop.f32.mrb[0].mxu0
        %v1410 = vadd.f32 %v727, %v1409
        %1411 = vmatprep.mubr.bf16.mxu0 %v586
        %1412 = vmatmul.mubr.bf16.gmra.mrb[0].mxu0 %v585
        %v1413 = vpop.f32.mrb[0].mxu0
        %v1414 = vadd.f32 %v723, %v1413
        %v1415 = vpop.f32.mrb[0].mxu0
        %v1416 = vadd.f32 %v727, %v1415
        %v1417 = vpop.f32.mrb[0].mxu0
        %v1418 = vadd.f32 %v723, %v1417
        %v1419 = vpop.f32.mrb[0].mxu0
        %v1420 = vadd.f32 %v727, %v1419
        %1421 = vmatprep.mubr.bf16.mxu0 %v593
        %1422 = vmatmul.mubr.bf16.gmra.mrb[0].mxu0 %v592
        %v1423 = vpop.f32.mrb[0].mxu0
        %v1424 = vadd.f32 %v723, %v1423
        %v1425 = vpop.f32.mrb[0].mxu0
        %v1426 = vadd.f32 %v727, %v1425
        %v1427 = vpop.f32.mrb[0].mxu0
        %v1428 = vadd.f32 %v723, %v1427
        %v1429 = vpop.f32.mrb[0].mxu0
        %v1430 = vadd.f32 %v727, %v1429
        %1431 = vmatprep.mubr.bf16.mxu0 %v600
        %1432 = vmatmul.mubr.bf16.gmra.mrb[0].mxu0 %v599
        %v1433 = vpop.f32.mrb[0].mxu0
        %v1434 = vadd.f32 %v723, %v1433
        %v1435 = vpop.f32.mrb[0].mxu0
        %v1436 = vadd.f32 %v727, %v1435
        %v1437 = vpop.f32.mrb[0].mxu0
        %v1438 = vadd.f32 %v723, %v1437
        %v1439 = vpop.f32.mrb[0].mxu0
        %v1440 = vadd.f32 %v727, %v1439
        %1441 = vmatprep.mubr.bf16.mxu0 %v607
        %1442 = vmatmul.mubr.bf16.gmra.mrb[0].mxu0 %v606
        %v1443 = vpop.f32.mrb[0].mxu0
        %v1444 = vadd.f32 %v723, %v1443
        %v1445 = vpop.f32.mrb[0].mxu0
        %v1446 = vadd.f32 %v727, %v1445
        %v1447 = vpop.f32.mrb[0].mxu0
        %v1448 = vadd.f32 %v723, %v1447
        %v1449 = vpop.f32.mrb[0].mxu0
        %v1450 = vadd.f32 %v727, %v1449
        %1451 = vmatprep.mubr.bf16.mxu0 %v614
        %1452 = vmatmul.mubr.bf16.gmra.mrb[0].mxu0 %v613
        %v1453 = vpop.f32.mrb[0].mxu0
        %v1454 = vadd.f32 %v723, %v1453
        %v1455 = vpop.f32.mrb[0].mxu0
        %v1456 = vadd.f32 %v727, %v1455
        %v1457 = vpop.f32.mrb[0].mxu0
        %v1458 = vadd.f32 %v723, %v1457
        %v1459 = vpop.f32.mrb[0].mxu0
        %v1460 = vadd.f32 %v727, %v1459
        %1461 = vdwg.mxu0
        %1462 = vmatprep.subr.bf16.mxu0 %v1057
        %1463 = vmatpush1.bf16.msra.mxu0 %v1056
        %1464 = vmatprep.subr.bf16.mxu0 %v1059
        %1465 = vmatpush1.bf16.msra.mxu0 %v1058
        %1466 = vmatprep.subr.bf16.mxu0 %v1061
        %1467 = vmatpush1.bf16.msra.mxu0 %v1060
        %1468 = vmatprep.subr.bf16.mxu0 %v1063
        %1469 = vmatpush1.bf16.msra.mxu0 %v1062
        %1470 = vmatprep.subr.bf16.mxu0 %v1065
        %1471 = vmatpush1.bf16.msra.mxu0 %v1064
        %1472 = vmatprep.subr.bf16.mxu0 %v1067
        %1473 = vmatpush1.bf16.msra.mxu0 %v1066
        %1474 = vmatprep.subr.bf16.mxu0 %v1069
        %1475 = vmatpush1.bf16.msra.mxu0 %v1068
        %1476 = vmatprep.subr.bf16.mxu0 %v1071
        %1477 = vmatpush1.bf16.msra.mxu0 %v1070
        %1478 = vmatprep.subr.bf16.mxu0 %v1073
        %1479 = vmatpush1.bf16.msra.mxu0 %v1072
        %1480 = vmatprep.subr.bf16.mxu0 %v1075
        %1481 = vmatpush1.bf16.msra.mxu0 %v1074
        %1482 = vmatprep.subr.bf16.mxu0 %v1077
        %1483 = vmatpush1.bf16.msra.mxu0 %v1076
        %1484 = vmatprep.subr.bf16.mxu0 %v1079
        %1485 = vmatpush1.bf16.msra.mxu0 %v1078
        %1486 = vmatprep.subr.bf16.mxu0 %v1081
        %1487 = vmatpush1.bf16.msra.mxu0 %v1080
        %1488 = vmatprep.subr.bf16.mxu0 %v1083
        %1489 = vmatpush1.bf16.msra.mxu0 %v1082
        %1490 = vmatprep.subr.bf16.mxu0 %v1085
        %1491 = vmatpush1.bf16.msra.mxu0 %v1084
        %1492 = vmatprep.subr.bf16.mxu0 %v1087
        %1493 = vmatpush1.bf16.msra.mxu0 %v1086
        %1494 = vmatprep.mubr.bf16.mxu0 %v511
        %1495 = vmatmul.mubr.bf16.gmra.mrb[0].mxu0 %v510
        %v1496 = vpop.f32.mrb[0].mxu0
        %v1497 = vadd.f32 %v1304, %v1496
        %v1498 = vpop.f32.mrb[0].mxu0
        %v1499 = vadd.f32 %v1306, %v1498
        %v1500 = vpop.f32.mrb[0].mxu0
        %v1501 = vadd.f32 %v1308, %v1500
        %v1502 = vpop.f32.mrb[0].mxu0
        %v1503 = vadd.f32 %v1310, %v1502
        %1504 = vmatprep.mubr.bf16.mxu0 %v518
        %1505 = vmatmul.mubr.bf16.gmra.mrb[0].mxu0 %v517
        %v1506 = vpop.f32.mrb[0].mxu0
        %v1507 = vadd.f32 %v1314, %v1506
        %v1508 = vpop.f32.mrb[0].mxu0
        %v1509 = vadd.f32 %v1316, %v1508
        %v1510 = vpop.f32.mrb[0].mxu0
        %v1511 = vadd.f32 %v1318, %v1510
        %v1512 = vpop.f32.mrb[0].mxu0
        %v1513 = vadd.f32 %v1320, %v1512
        %1514 = vmatprep.mubr.bf16.mxu0 %v525
        %1515 = vmatmul.mubr.bf16.gmra.mrb[0].mxu0 %v524
        %v1516 = vpop.f32.mrb[0].mxu0
        %v1517 = vadd.f32 %v1324, %v1516
        %v1518 = vpop.f32.mrb[0].mxu0
        %v1519 = vadd.f32 %v1326, %v1518
        %v1520 = vpop.f32.mrb[0].mxu0
        %v1521 = vadd.f32 %v1328, %v1520
        %v1522 = vpop.f32.mrb[0].mxu0
        %v1523 = vadd.f32 %v1330, %v1522
        %1524 = vmatprep.mubr.bf16.mxu0 %v532
        %1525 = vmatmul.mubr.bf16.gmra.mrb[0].mxu0 %v531
        %v1526 = vpop.f32.mrb[0].mxu0
        %v1527 = vadd.f32 %v1334, %v1526
        %v1528 = vpop.f32.mrb[0].mxu0
        %v1529 = vadd.f32 %v1336, %v1528
        %v1530 = vpop.f32.mrb[0].mxu0
        %v1531 = vadd.f32 %v1338, %v1530
        %v1532 = vpop.f32.mrb[0].mxu0
        %v1533 = vadd.f32 %v1340, %v1532
        %1534 = vmatprep.mubr.bf16.mxu0 %v539
        %1535 = vmatmul.mubr.bf16.gmra.mrb[0].mxu0 %v538
        %v1536 = vpop.f32.mrb[0].mxu0
        %v1537 = vadd.f32 %v1344, %v1536
        %v1538 = vpop.f32.mrb[0].mxu0
        %v1539 = vadd.f32 %v1346, %v1538
        %v1540 = vpop.f32.mrb[0].mxu0
        %v1541 = vadd.f32 %v1348, %v1540
        %v1542 = vpop.f32.mrb[0].mxu0
        %v1543 = vadd.f32 %v1350, %v1542
        %1544 = vmatprep.mubr.bf16.mxu0 %v546
        %1545 = vmatmul.mubr.bf16.gmra.mrb[0].mxu0 %v545
        %v1546 = vpop.f32.mrb[0].mxu0
        %v1547 = vadd.f32 %v1354, %v1546
        %v1548 = vpop.f32.mrb[0].mxu0
        %v1549 = vadd.f32 %v1356, %v1548
        %v1550 = vpop.f32.mrb[0].mxu0
        %v1551 = vadd.f32 %v1358, %v1550
        %v1552 = vpop.f32.mrb[0].mxu0
        %v1553 = vadd.f32 %v1360, %v1552
        %1554 = vmatprep.mubr.bf16.mxu0 %v553
        %1555 = vmatmul.mubr.bf16.gmra.mrb[0].mxu0 %v552
        %v1556 = vpop.f32.mrb[0].mxu0
        %v1557 = vadd.f32 %v1364, %v1556
        %v1558 = vpop.f32.mrb[0].mxu0
        %v1559 = vadd.f32 %v1366, %v1558
        %v1560 = vpop.f32.mrb[0].mxu0
        %v1561 = vadd.f32 %v1368, %v1560
        %v1562 = vpop.f32.mrb[0].mxu0
        %v1563 = vadd.f32 %v1370, %v1562
        %1564 = vmatprep.mubr.bf16.mxu0 %v560
        %1565 = vmatmul.mubr.bf16.gmra.mrb[0].mxu0 %v559
        %v1566 = vpop.f32.mrb[0].mxu0
        %v1567 = vadd.f32 %v1374, %v1566
        %v1568 = vpop.f32.mrb[0].mxu0
        %v1569 = vadd.f32 %v1376, %v1568
        %v1570 = vpop.f32.mrb[0].mxu0
        %v1571 = vadd.f32 %v1378, %v1570
        %v1572 = vpop.f32.mrb[0].mxu0
        %v1573 = vadd.f32 %v1380, %v1572
        %1574 = vmatprep.mubr.bf16.mxu0 %v567
        %1575 = vmatmul.mubr.bf16.gmra.mrb[0].mxu0 %v566
        %v1576 = vpop.f32.mrb[0].mxu0
        %v1577 = vadd.f32 %v1384, %v1576
        %v1578 = vpop.f32.mrb[0].mxu0
        %v1579 = vadd.f32 %v1386, %v1578
        %v1580 = vpop.f32.mrb[0].mxu0
        %v1581 = vadd.f32 %v1388, %v1580
        %v1582 = vpop.f32.mrb[0].mxu0
        %v1583 = vadd.f32 %v1390, %v1582
        %1584 = vmatprep.mubr.bf16.mxu0 %v574
        %1585 = vmatmul.mubr.bf16.gmra.mrb[0].mxu0 %v573
        %v1586 = vpop.f32.mrb[0].mxu0
        %v1587 = vadd.f32 %v1394, %v1586
        %v1588 = vpop.f32.mrb[0].mxu0
        %v1589 = vadd.f32 %v1396, %v1588
        %v1590 = vpop.f32.mrb[0].mxu0
        %v1591 = vadd.f32 %v1398, %v1590
        %v1592 = vpop.f32.mrb[0].mxu0
        %v1593 = vadd.f32 %v1400, %v1592
        %1594 = vmatprep.mubr.bf16.mxu0 %v581
        %1595 = vmatmul.mubr.bf16.gmra.mrb[0].mxu0 %v580
        %v1596 = vpop.f32.mrb[0].mxu0
        %v1597 = vadd.f32 %v1404, %v1596
        %v1598 = vpop.f32.mrb[0].mxu0
        %v1599 = vadd.f32 %v1406, %v1598
        %v1600 = vpop.f32.mrb[0].mxu0
        %v1601 = vadd.f32 %v1408, %v1600
        %v1602 = vpop.f32.mrb[0].mxu0
        %v1603 = vadd.f32 %v1410, %v1602
        %1604 = vmatprep.mubr.bf16.mxu0 %v588
        %1605 = vmatmul.mubr.bf16.gmra.mrb[0].mxu0 %v587
        %v1606 = vpop.f32.mrb[0].mxu0
        %v1607 = vadd.f32 %v1414, %v1606
        %v1608 = vpop.f32.mrb[0].mxu0
        %v1609 = vadd.f32 %v1416, %v1608
        %v1610 = vpop.f32.mrb[0].mxu0
        %v1611 = vadd.f32 %v1418, %v1610
        %v1612 = vpop.f32.mrb[0].mxu0
        %v1613 = vadd.f32 %v1420, %v1612
        %1614 = vmatprep.mubr.bf16.mxu0 %v595
        %1615 = vmatmul.mubr.bf16.gmra.mrb[0].mxu0 %v594
        %v1616 = vpop.f32.mrb[0].mxu0
        %v1617 = vadd.f32 %v1424, %v1616
        %v1618 = vpop.f32.mrb[0].mxu0
        %v1619 = vadd.f32 %v1426, %v1618
        %v1620 = vpop.f32.mrb[0].mxu0
        %v1621 = vadd.f32 %v1428, %v1620
        %v1622 = vpop.f32.mrb[0].mxu0
        %v1623 = vadd.f32 %v1430, %v1622
        %1624 = vmatprep.mubr.bf16.mxu0 %v602
        %1625 = vmatmul.mubr.bf16.gmra.mrb[0].mxu0 %v601
        %v1626 = vpop.f32.mrb[0].mxu0
        %v1627 = vadd.f32 %v1434, %v1626
        %v1628 = vpop.f32.mrb[0].mxu0
        %v1629 = vadd.f32 %v1436, %v1628
        %v1630 = vpop.f32.mrb[0].mxu0
        %v1631 = vadd.f32 %v1438, %v1630
        %v1632 = vpop.f32.mrb[0].mxu0
        %v1633 = vadd.f32 %v1440, %v1632
        %1634 = vmatprep.mubr.bf16.mxu0 %v609
        %1635 = vmatmul.mubr.bf16.gmra.mrb[0].mxu0 %v608
        %v1636 = vpop.f32.mrb[0].mxu0
        %v1637 = vadd.f32 %v1444, %v1636
        %v1638 = vpop.f32.mrb[0].mxu0
        %v1639 = vadd.f32 %v1446, %v1638
        %v1640 = vpop.f32.mrb[0].mxu0
        %v1641 = vadd.f32 %v1448, %v1640
        %v1642 = vpop.f32.mrb[0].mxu0
        %v1643 = vadd.f32 %v1450, %v1642
        %1644 = vmatprep.mubr.bf16.mxu0 %v616
        %1645 = vmatmul.mubr.bf16.gmra.mrb[0].mxu0 %v615
        %v1646 = vpop.f32.mrb[0].mxu0
        %v1647 = vadd.f32 %v1454, %v1646
        %v1648 = vpop.f32.mrb[0].mxu0
        %v1649 = vadd.f32 %v1456, %v1648
        %v1650 = vpop.f32.mrb[0].mxu0
        %v1651 = vadd.f32 %v1458, %v1650
        %v1652 = vpop.f32.mrb[0].mxu0
        %v1653 = vadd.f32 %v1460, %v1652
        %1654 = vdwg.mxu0
        %1655 = vmatprep.subr.bf16.mxu0 %v1089
        %1656 = vmatpush1.bf16.msra.mxu0 %v1088
        %1657 = vmatprep.subr.bf16.mxu0 %v1091
        %1658 = vmatpush1.bf16.msra.mxu0 %v1090
        %1659 = vmatprep.subr.bf16.mxu0 %v1093
        %1660 = vmatpush1.bf16.msra.mxu0 %v1092
        %1661 = vmatprep.subr.bf16.mxu0 %v1095
        %1662 = vmatpush1.bf16.msra.mxu0 %v1094
        %1663 = vmatprep.subr.bf16.mxu0 %v1097
        %1664 = vmatpush1.bf16.msra.mxu0 %v1096
        %1665 = vmatprep.subr.bf16.mxu0 %v1099
        %1666 = vmatpush1.bf16.msra.mxu0 %v1098
        %1667 = vmatprep.subr.bf16.mxu0 %v1101
        %1668 = vmatpush1.bf16.msra.mxu0 %v1100
        %1669 = vmatprep.subr.bf16.mxu0 %v1103
        %1670 = vmatpush1.bf16.msra.mxu0 %v1102
        %1671 = vmatprep.subr.bf16.mxu0 %v1105
        %1672 = vmatpush1.bf16.msra.mxu0 %v1104
        %1673 = vmatprep.subr.bf16.mxu0 %v1107
        %1674 = vmatpush1.bf16.msra.mxu0 %v1106
        %1675 = vmatprep.subr.bf16.mxu0 %v1109
        %1676 = vmatpush1.bf16.msra.mxu0 %v1108
        %1677 = vmatprep.subr.bf16.mxu0 %v1111
        %1678 = vmatpush1.bf16.msra.mxu0 %v1110
        %1679 = vmatprep.subr.bf16.mxu0 %v1113
        %1680 = vmatpush1.bf16.msra.mxu0 %v1112
        %1681 = vmatprep.subr.bf16.mxu0 %v1115
        %1682 = vmatpush1.bf16.msra.mxu0 %v1114
        %1683 = vmatprep.subr.bf16.mxu0 %v1117
        %1684 = vmatpush1.bf16.msra.mxu0 %v1116
        %1685 = vmatprep.subr.bf16.mxu0 %v1119
        %1686 = vmatpush1.bf16.msra.mxu0 %v1118
        %1687 = vmatprep.mubr.bf16.mxu0 %v513
        %1688 = vmatmul.mubr.bf16.gmra.mrb[0].mxu0 %v512
        %v1689 = vpop.f32.mrb[0].mxu0
        %v1690 = vadd.f32 %v1497, %v1689
        %v1691 = vpop.f32.mrb[0].mxu0
        %v1692 = vadd.f32 %v1499, %v1691
        %v1693 = vpop.f32.mrb[0].mxu0
        %v1694 = vadd.f32 %v1501, %v1693
        %v1695 = vpop.f32.mrb[0].mxu0
        %v1696 = vadd.f32 %v1503, %v1695
        %1697 = vmatprep.mubr.bf16.mxu0 %v520
        %1698 = vmatmul.mubr.bf16.gmra.mrb[0].mxu0 %v519
        %v1699 = vpop.f32.mrb[0].mxu0
        %v1700 = vadd.f32 %v1507, %v1699
        %v1701 = vpop.f32.mrb[0].mxu0
        %v1702 = vadd.f32 %v1509, %v1701
        %v1703 = vpop.f32.mrb[0].mxu0
        %v1704 = vadd.f32 %v1511, %v1703
        %v1705 = vpop.f32.mrb[0].mxu0
        %v1706 = vadd.f32 %v1513, %v1705
        %1707 = vmatprep.mubr.bf16.mxu0 %v527
        %1708 = vmatmul.mubr.bf16.gmra.mrb[0].mxu0 %v526
        %v1709 = vpop.f32.mrb[0].mxu0
        %v1710 = vadd.f32 %v1517, %v1709
        %v1711 = vpop.f32.mrb[0].mxu0
        %v1712 = vadd.f32 %v1519, %v1711
        %v1713 = vpop.f32.mrb[0].mxu0
        %v1714 = vadd.f32 %v1521, %v1713
        %v1715 = vpop.f32.mrb[0].mxu0
        %v1716 = vadd.f32 %v1523, %v1715
        %1717 = vmatprep.mubr.bf16.mxu0 %v534
        %1718 = vmatmul.mubr.bf16.gmra.mrb[0].mxu0 %v533
        %v1719 = vpop.f32.mrb[0].mxu0
        %v1720 = vadd.f32 %v1527, %v1719
        %v1721 = vpop.f32.mrb[0].mxu0
        %v1722 = vadd.f32 %v1529, %v1721
        %v1723 = vpop.f32.mrb[0].mxu0
        %v1724 = vadd.f32 %v1531, %v1723
        %v1725 = vpop.f32.mrb[0].mxu0
        %v1726 = vadd.f32 %v1533, %v1725
        %1727 = vmatprep.mubr.bf16.mxu0 %v541
        %1728 = vmatmul.mubr.bf16.gmra.mrb[0].mxu0 %v540
        %v1729 = vpop.f32.mrb[0].mxu0
        %v1730 = vadd.f32 %v1537, %v1729
        %v1731 = vpop.f32.mrb[0].mxu0
        %v1732 = vadd.f32 %v1539, %v1731
        %v1733 = vpop.f32.mrb[0].mxu0
        %v1734 = vadd.f32 %v1541, %v1733
        %v1735 = vpop.f32.mrb[0].mxu0
        %v1736 = vadd.f32 %v1543, %v1735
        %1737 = vmatprep.mubr.bf16.mxu0 %v548
        %1738 = vmatmul.mubr.bf16.gmra.mrb[0].mxu0 %v547
        %v1739 = vpop.f32.mrb[0].mxu0
        %v1740 = vadd.f32 %v1547, %v1739
        %v1741 = vpop.f32.mrb[0].mxu0
        %v1742 = vadd.f32 %v1549, %v1741
        %v1743 = vpop.f32.mrb[0].mxu0
        %v1744 = vadd.f32 %v1551, %v1743
        %v1745 = vpop.f32.mrb[0].mxu0
        %v1746 = vadd.f32 %v1553, %v1745
        %1747 = vmatprep.mubr.bf16.mxu0 %v555
        %1748 = vmatmul.mubr.bf16.gmra.mrb[0].mxu0 %v554
        %v1749 = vpop.f32.mrb[0].mxu0
        %v1750 = vadd.f32 %v1557, %v1749
        %v1751 = vpop.f32.mrb[0].mxu0
        %v1752 = vadd.f32 %v1559, %v1751
        %v1753 = vpop.f32.mrb[0].mxu0
        %v1754 = vadd.f32 %v1561, %v1753
        %v1755 = vpop.f32.mrb[0].mxu0
        %v1756 = vadd.f32 %v1563, %v1755
        %1757 = vmatprep.mubr.bf16.mxu0 %v562
        %1758 = vmatmul.mubr.bf16.gmra.mrb[0].mxu0 %v561
        %v1759 = vpop.f32.mrb[0].mxu0
        %v1760 = vadd.f32 %v1567, %v1759
        %v1761 = vpop.f32.mrb[0].mxu0
        %v1762 = vadd.f32 %v1569, %v1761
        %v1763 = vpop.f32.mrb[0].mxu0
        %v1764 = vadd.f32 %v1571, %v1763
        %v1765 = vpop.f32.mrb[0].mxu0
        %v1766 = vadd.f32 %v1573, %v1765
        %1767 = vmatprep.mubr.bf16.mxu0 %v569
        %1768 = vmatmul.mubr.bf16.gmra.mrb[0].mxu0 %v568
        %v1769 = vpop.f32.mrb[0].mxu0
        %v1770 = vadd.f32 %v1577, %v1769
        %v1771 = vpop.f32.mrb[0].mxu0
        %v1772 = vadd.f32 %v1579, %v1771
        %v1773 = vpop.f32.mrb[0].mxu0
        %v1774 = vadd.f32 %v1581, %v1773
        %v1775 = vpop.f32.mrb[0].mxu0
        %v1776 = vadd.f32 %v1583, %v1775
        %1777 = vmatprep.mubr.bf16.mxu0 %v576
        %1778 = vmatmul.mubr.bf16.gmra.mrb[0].mxu0 %v575
        %v1779 = vpop.f32.mrb[0].mxu0
        %v1780 = vadd.f32 %v1587, %v1779
        %v1781 = vpop.f32.mrb[0].mxu0
        %v1782 = vadd.f32 %v1589, %v1781
        %v1783 = vpop.f32.mrb[0].mxu0
        %v1784 = vadd.f32 %v1591, %v1783
        %v1785 = vpop.f32.mrb[0].mxu0
        %v1786 = vadd.f32 %v1593, %v1785
        %1787 = vmatprep.mubr.bf16.mxu0 %v583
        %1788 = vmatmul.mubr.bf16.gmra.mrb[0].mxu0 %v582
        %v1789 = vpop.f32.mrb[0].mxu0
        %v1790 = vadd.f32 %v1597, %v1789
        %v1791 = vpop.f32.mrb[0].mxu0
        %v1792 = vadd.f32 %v1599, %v1791
        %v1793 = vpop.f32.mrb[0].mxu0
        %v1794 = vadd.f32 %v1601, %v1793
        %v1795 = vpop.f32.mrb[0].mxu0
        %v1796 = vadd.f32 %v1603, %v1795
        %1797 = vmatprep.mubr.bf16.mxu0 %v590
        %1798 = vmatmul.mubr.bf16.gmra.mrb[0].mxu0 %v589
        %v1799 = vpop.f32.mrb[0].mxu0
        %v1800 = vadd.f32 %v1607, %v1799
        %v1801 = vpop.f32.mrb[0].mxu0
        %v1802 = vadd.f32 %v1609, %v1801
        %v1803 = vpop.f32.mrb[0].mxu0
        %v1804 = vadd.f32 %v1611, %v1803
        %v1805 = vpop.f32.mrb[0].mxu0
        %v1806 = vadd.f32 %v1613, %v1805
        %1807 = vmatprep.mubr.bf16.mxu0 %v597
        %1808 = vmatmul.mubr.bf16.gmra.mrb[0].mxu0 %v596
        %v1809 = vpop.f32.mrb[0].mxu0
        %v1810 = vadd.f32 %v1617, %v1809
        %v1811 = vpop.f32.mrb[0].mxu0
        %v1812 = vadd.f32 %v1619, %v1811
        %v1813 = vpop.f32.mrb[0].mxu0
        %v1814 = vadd.f32 %v1621, %v1813
        %v1815 = vpop.f32.mrb[0].mxu0
        %v1816 = vadd.f32 %v1623, %v1815
        %1817 = vmatprep.mubr.bf16.mxu0 %v604
        %1818 = vmatmul.mubr.bf16.gmra.mrb[0].mxu0 %v603
        %v1819 = vpop.f32.mrb[0].mxu0
        %v1820 = vadd.f32 %v1627, %v1819
        %v1821 = vpop.f32.mrb[0].mxu0
        %v1822 = vadd.f32 %v1629, %v1821
        %v1823 = vpop.f32.mrb[0].mxu0
        %v1824 = vadd.f32 %v1631, %v1823
        %v1825 = vpop.f32.mrb[0].mxu0
        %v1826 = vadd.f32 %v1633, %v1825
        %1827 = vmatprep.mubr.bf16.mxu0 %v611
        %1828 = vmatmul.mubr.bf16.gmra.mrb[0].mxu0 %v610
        %v1829 = vpop.f32.mrb[0].mxu0
        %v1830 = vadd.f32 %v1637, %v1829
        %v1831 = vpop.f32.mrb[0].mxu0
        %v1832 = vadd.f32 %v1639, %v1831
        %v1833 = vpop.f32.mrb[0].mxu0
        %v1834 = vadd.f32 %v1641, %v1833
        %v1835 = vpop.f32.mrb[0].mxu0
        %v1836 = vadd.f32 %v1643, %v1835
        %1837 = vmatprep.mubr.bf16.mxu0 %v618
        %1838 = vmatmul.mubr.bf16.gmra.mrb[0].mxu0 %v617
        %v1839 = vpop.f32.mrb[0].mxu0
        %v1840 = vadd.f32 %v1647, %v1839
        %v1841 = vpop.f32.mrb[0].mxu0
        %v1842 = vadd.f32 %v1649, %v1841
        %v1843 = vpop.f32.mrb[0].mxu0
        %v1844 = vadd.f32 %v1651, %v1843
        %v1845 = vpop.f32.mrb[0].mxu0
        %v1846 = vadd.f32 %v1653, %v1845
        %1847 = vdwg.mxu0
        %1848 = vmatprep.subr.bf16.mxu0 %v1121
        %1849 = vmatpush1.bf16.msra.mxu0 %v1120
        %1850 = vmatprep.subr.bf16.mxu0 0
        %1851 = vmatpush1.bf16.msra.mxu0 0
        %1852 = vmatprep.subr.bf16.mxu0 0
        %1853 = vmatpush1.bf16.msra.mxu0 0
        %1854 = vmatprep.subr.bf16.mxu0 0
        %1855 = vmatpush1.bf16.msra.mxu0 0
        %1856 = vmatprep.subr.bf16.mxu0 0
        %1857 = vmatpush1.bf16.msra.mxu0 0
        %1858 = vmatprep.subr.bf16.mxu0 0
        %1859 = vmatpush1.bf16.msra.mxu0 0
        %1860 = vmatprep.subr.bf16.mxu0 0
        %1861 = vmatpush1.bf16.msra.mxu0 0
        %1862 = vmatprep.subr.bf16.mxu0 0
        %1863 = vmatpush1.bf16.msra.mxu0 0
        %1864 = vmatprep.subr.bf16.mxu0 0
        %1865 = vmatpush1.bf16.msra.mxu0 0
        %1866 = vmatprep.subr.bf16.mxu0 0
        %1867 = vmatpush1.bf16.msra.mxu0 0
        %1868 = vmatprep.subr.bf16.mxu0 0
        %1869 = vmatpush1.bf16.msra.mxu0 0
        %1870 = vmatprep.subr.bf16.mxu0 0
        %1871 = vmatpush1.bf16.msra.mxu0 0
        %1872 = vmatprep.subr.bf16.mxu0 0
        %1873 = vmatpush1.bf16.msra.mxu0 0
        %1874 = vmatprep.subr.bf16.mxu0 0
        %1875 = vmatpush1.bf16.msra.mxu0 0
        %1876 = vmatprep.subr.bf16.mxu0 0
        %1877 = vmatpush1.bf16.msra.mxu0 0
        %1878 = vmatprep.subr.bf16.mxu0 0
        %1879 = vmatpush1.bf16.msra.mxu0 0
        %1880 = vmatprep.mubr.bf16.mxu0 0
        %1881 = vmatmul.mubr.bf16.gmra.mrb[0].mxu0 %v1222
        %v1882 = vpop.f32.mrb[0].mxu0
        %v1883 = vadd.f32 %v1690, %v1882
        %v1884 = vpop.f32.mrb[0].mxu0
        %v1885 = vadd.f32 %v1692, %v1884
        %v1886 = vpop.f32.mrb[0].mxu0
        %v1887 = vadd.f32 %v1694, %v1886
        %v1888 = vpop.f32.mrb[0].mxu0
        %v1889 = vadd.f32 %v1696, %v1888
        %1890 = vmatprep.mubr.bf16.mxu0 0
        %1891 = vmatmul.mubr.bf16.gmra.mrb[0].mxu0 %v1225
        %v1892 = vpop.f32.mrb[0].mxu0
        %v1893 = vadd.f32 %v1700, %v1892
        %v1894 = vpop.f32.mrb[0].mxu0
        %v1895 = vadd.f32 %v1702, %v1894
        %v1896 = vpop.f32.mrb[0].mxu0
        %v1897 = vadd.f32 %v1704, %v1896
        %v1898 = vpop.f32.mrb[0].mxu0
        %v1899 = vadd.f32 %v1706, %v1898
        %1900 = vmatprep.mubr.bf16.mxu0 0
        %1901 = vmatmul.mubr.bf16.gmra.mrb[0].mxu0 %v1228
        %v1902 = vpop.f32.mrb[0].mxu0
        %v1903 = vadd.f32 %v1710, %v1902
        %v1904 = vpop.f32.mrb[0].mxu0
        %v1905 = vadd.f32 %v1712, %v1904
        %v1906 = vpop.f32.mrb[0].mxu0
        %v1907 = vadd.f32 %v1714, %v1906
        %v1908 = vpop.f32.mrb[0].mxu0
        %v1909 = vadd.f32 %v1716, %v1908
        %1910 = vmatprep.mubr.bf16.mxu0 0
        %1911 = vmatmul.mubr.bf16.gmra.mrb[0].mxu0 %v1231
        %v1912 = vpop.f32.mrb[0].mxu0
        %v1913 = vadd.f32 %v1720, %v1912
        %v1914 = vpop.f32.mrb[0].mxu0
        %v1915 = vadd.f32 %v1722, %v1914
        %v1916 = vpop.f32.mrb[0].mxu0
        %v1917 = vadd.f32 %v1724, %v1916
        %v1918 = vpop.f32.mrb[0].mxu0
        %v1919 = vadd.f32 %v1726, %v1918
        %1920 = vmatprep.mubr.bf16.mxu0 0
        %1921 = vmatmul.mubr.bf16.gmra.mrb[0].mxu0 %v1234
        %v1922 = vpop.f32.mrb[0].mxu0
        %v1923 = vadd.f32 %v1730, %v1922
        %v1924 = vpop.f32.mrb[0].mxu0
        %v1925 = vadd.f32 %v1732, %v1924
        %v1926 = vpop.f32.mrb[0].mxu0
        %v1927 = vadd.f32 %v1734, %v1926
        %v1928 = vpop.f32.mrb[0].mxu0
        %v1929 = vadd.f32 %v1736, %v1928
        %1930 = vmatprep.mubr.bf16.mxu0 0
        %1931 = vmatmul.mubr.bf16.gmra.mrb[0].mxu0 %v1237
        %v1932 = vpop.f32.mrb[0].mxu0
        %v1933 = vadd.f32 %v1740, %v1932
        %v1934 = vpop.f32.mrb[0].mxu0
        %v1935 = vadd.f32 %v1742, %v1934
        %v1936 = vpop.f32.mrb[0].mxu0
        %v1937 = vadd.f32 %v1744, %v1936
        %v1938 = vpop.f32.mrb[0].mxu0
        %v1939 = vadd.f32 %v1746, %v1938
        %1940 = vmatprep.mubr.bf16.mxu0 0
        %1941 = vmatmul.mubr.bf16.gmra.mrb[0].mxu0 %v1240
        %v1942 = vpop.f32.mrb[0].mxu0
        %v1943 = vadd.f32 %v1750, %v1942
        %v1944 = vpop.f32.mrb[0].mxu0
        %v1945 = vadd.f32 %v1752, %v1944
        %v1946 = vpop.f32.mrb[0].mxu0
        %v1947 = vadd.f32 %v1754, %v1946
        %v1948 = vpop.f32.mrb[0].mxu0
        %v1949 = vadd.f32 %v1756, %v1948
        %1950 = vmatprep.mubr.bf16.mxu0 0
        %1951 = vmatmul.mubr.bf16.gmra.mrb[0].mxu0 %v1243
        %v1952 = vpop.f32.mrb[0].mxu0
        %v1953 = vadd.f32 %v1760, %v1952
        %v1954 = vpop.f32.mrb[0].mxu0
        %v1955 = vadd.f32 %v1762, %v1954
        %v1956 = vpop.f32.mrb[0].mxu0
        %v1957 = vadd.f32 %v1764, %v1956
        %v1958 = vpop.f32.mrb[0].mxu0
        %v1959 = vadd.f32 %v1766, %v1958
        %1960 = vmatprep.mubr.bf16.mxu0 0
        %1961 = vmatmul.mubr.bf16.gmra.mrb[0].mxu0 %v1246
        %v1962 = vpop.f32.mrb[0].mxu0
        %v1963 = vadd.f32 %v1770, %v1962
        %v1964 = vpop.f32.mrb[0].mxu0
        %v1965 = vadd.f32 %v1772, %v1964
        %v1966 = vpop.f32.mrb[0].mxu0
        %v1967 = vadd.f32 %v1774, %v1966
        %v1968 = vpop.f32.mrb[0].mxu0
        %v1969 = vadd.f32 %v1776, %v1968
        %1970 = vmatprep.mubr.bf16.mxu0 0
        %1971 = vmatmul.mubr.bf16.gmra.mrb[0].mxu0 %v1249
        %v1972 = vpop.f32.mrb[0].mxu0
        %v1973 = vadd.f32 %v1780, %v1972
        %v1974 = vpop.f32.mrb[0].mxu0
        %v1975 = vadd.f32 %v1782, %v1974
        %v1976 = vpop.f32.mrb[0].mxu0
        %v1977 = vadd.f32 %v1784, %v1976
        %v1978 = vpop.f32.mrb[0].mxu0
        %v1979 = vadd.f32 %v1786, %v1978
        %1980 = vmatprep.mubr.bf16.mxu0 0
        %1981 = vmatmul.mubr.bf16.gmra.mrb[0].mxu0 %v1252
        %v1982 = vpop.f32.mrb[0].mxu0
        %v1983 = vadd.f32 %v1790, %v1982
        %v1984 = vpop.f32.mrb[0].mxu0
        %v1985 = vadd.f32 %v1792, %v1984
        %v1986 = vpop.f32.mrb[0].mxu0
        %v1987 = vadd.f32 %v1794, %v1986
        %v1988 = vpop.f32.mrb[0].mxu0
        %v1989 = vadd.f32 %v1796, %v1988
        %1990 = vmatprep.mubr.bf16.mxu0 0
        %1991 = vmatmul.mubr.bf16.gmra.mrb[0].mxu0 %v1255
        %v1992 = vpop.f32.mrb[0].mxu0
        %v1993 = vadd.f32 %v1800, %v1992
        %v1994 = vpop.f32.mrb[0].mxu0
        %v1995 = vadd.f32 %v1802, %v1994
        %v1996 = vpop.f32.mrb[0].mxu0
        %v1997 = vadd.f32 %v1804, %v1996
        %v1998 = vpop.f32.mrb[0].mxu0
        %v1999 = vadd.f32 %v1806, %v1998
        %2000 = vmatprep.mubr.bf16.mxu0 0
        %2001 = vmatmul.mubr.bf16.gmra.mrb[0].mxu0 %v1258
        %v2002 = vpop.f32.mrb[0].mxu0
        %v2003 = vadd.f32 %v1810, %v2002
        %v2004 = vpop.f32.mrb[0].mxu0
        %v2005 = vadd.f32 %v1812, %v2004
        %v2006 = vpop.f32.mrb[0].mxu0
        %v2007 = vadd.f32 %v1814, %v2006
        %v2008 = vpop.f32.mrb[0].mxu0
        %v2009 = vadd.f32 %v1816, %v2008
        %2010 = vmatprep.mubr.bf16.mxu0 0
        %2011 = vmatmul.mubr.bf16.gmra.mrb[0].mxu0 %v1261
        %v2012 = vpop.f32.mrb[0].mxu0
        %v2013 = vadd.f32 %v1820, %v2012
        %v2014 = vpop.f32.mrb[0].mxu0
        %v2015 = vadd.f32 %v1822, %v2014
        %v2016 = vpop.f32.mrb[0].mxu0
        %v2017 = vadd.f32 %v1824, %v2016
        %v2018 = vpop.f32.mrb[0].mxu0
        %v2019 = vadd.f32 %v1826, %v2018
        %2020 = vmatprep.mubr.bf16.mxu0 0
        %2021 = vmatmul.mubr.bf16.gmra.mrb[0].mxu0 %v1264
        %v2022 = vpop.f32.mrb[0].mxu0
        %v2023 = vadd.f32 %v1830, %v2022
        %v2024 = vpop.f32.mrb[0].mxu0
        %v2025 = vadd.f32 %v1832, %v2024
        %v2026 = vpop.f32.mrb[0].mxu0
        %v2027 = vadd.f32 %v1834, %v2026
        %v2028 = vpop.f32.mrb[0].mxu0
        %v2029 = vadd.f32 %v1836, %v2028
        %2030 = vmatprep.mubr.bf16.mxu0 0
        %2031 = vmatmul.mubr.bf16.gmra.mrb[0].mxu0 %v1267
        %v2032 = vpop.f32.mrb[0].mxu0
        %v2033 = vadd.f32 %v1840, %v2032
        %v2034 = vpop.f32.mrb[0].mxu0
        %v2035 = vadd.f32 %v1842, %v2034
        %v2036 = vpop.f32.mrb[0].mxu0
        %v2037 = vadd.f32 %v1844, %v2036
        %v2038 = vpop.f32.mrb[0].mxu0
        %v2039 = vadd.f32 %v1846, %v2038
        %2040 = vdwg.mxu0
        %v2041 = vmax.f32 %v1883, 0.0
        %v2042 = vmax.f32 %v1885, 0.0
        %v2043 = vmax.f32 %v1887, 0.0
        %v2044 = vmax.f32 %v1889, 0.0
        %v2045 = vmax.f32 %v1893, 0.0
        %v2046 = vmax.f32 %v1895, 0.0
        %v2047 = vmax.f32 %v1897, 0.0
        %v2048 = vmax.f32 %v1899, 0.0
        %v2049 = vmax.f32 %v1903, 0.0
        %v2050 = vmax.f32 %v1905, 0.0
        %v2051 = vmax.f32 %v1907, 0.0
        %v2052 = vmax.f32 %v1909, 0.0
        %v2053 = vmax.f32 %v1913, 0.0
        %v2054 = vmax.f32 %v1915, 0.0
        %v2055 = vmax.f32 %v1917, 0.0
        %v2056 = vmax.f32 %v1919, 0.0
        %v2057 = vmax.f32 %v1923, 0.0
        %v2058 = vmax.f32 %v1925, 0.0
        %v2059 = vmax.f32 %v1927, 0.0
        %v2060 = vmax.f32 %v1929, 0.0
        %v2061 = vmax.f32 %v1933, 0.0
        %v2062 = vmax.f32 %v1935, 0.0
        %v2063 = vmax.f32 %v1937, 0.0
        %v2064 = vmax.f32 %v1939, 0.0
        %v2065 = vmax.f32 %v1943, 0.0
        %v2066 = vmax.f32 %v1945, 0.0
        %v2067 = vmax.f32 %v1947, 0.0
        %v2068 = vmax.f32 %v1949, 0.0
        %v2069 = vmax.f32 %v1953, 0.0
        %v2070 = vmax.f32 %v1955, 0.0
        %v2071 = vmax.f32 %v1957, 0.0
        %v2072 = vmax.f32 %v1959, 0.0
        %v2073 = vmax.f32 %v1963, 0.0
        %v2074 = vmax.f32 %v1965, 0.0
        %v2075 = vmax.f32 %v1967, 0.0
        %v2076 = vmax.f32 %v1969, 0.0
        %v2077 = vmax.f32 %v1973, 0.0
        %v2078 = vmax.f32 %v1975, 0.0
        %v2079 = vmax.f32 %v1977, 0.0
        %v2080 = vmax.f32 %v1979, 0.0
        %v2081 = vmax.f32 %v1983, 0.0
        %v2082 = vmax.f32 %v1985, 0.0
        %v2083 = vmax.f32 %v1987, 0.0
        %v2084 = vmax.f32 %v1989, 0.0
        %v2085 = vmax.f32 %v1993, 0.0
        %v2086 = vmax.f32 %v1995, 0.0
        %v2087 = vmax.f32 %v1997, 0.0
        %v2088 = vmax.f32 %v1999, 0.0
        %v2089 = vmax.f32 %v2003, 0.0
        %v2090 = vmax.f32 %v2005, 0.0
        %v2091 = vmax.f32 %v2007, 0.0
        %v2092 = vmax.f32 %v2009, 0.0
        %v2093 = vmax.f32 %v2013, 0.0
        %v2094 = vmax.f32 %v2015, 0.0
        %v2095 = vmax.f32 %v2017, 0.0
        %v2096 = vmax.f32 %v2019, 0.0
        %v2097 = vmax.f32 %v2023, 0.0
        %v2098 = vmax.f32 %v2025, 0.0
        %v2099 = vmax.f32 %v2027, 0.0
        %v2100 = vmax.f32 %v2029, 0.0
        %v2101 = vmax.f32 %v2033, 0.0
        %v2102 = vmax.f32 %v2035, 0.0
        %v2103 = vmax.f32 %v2037, 0.0
        %v2104 = vmax.f32 %v2039, 0.0
        %v2105 = vpack.c.bf16 %v2043, %v2041
        %v2106 = vpack.c.bf16 %v2044, %v2042
        %v2107 = vpack.c.bf16 %v2047, %v2045
        %v2108 = vpack.c.bf16 %v2048, %v2046
        %v2109 = vpack.c.bf16 %v2051, %v2049
        %v2110 = vpack.c.bf16 %v2052, %v2050
        %v2111 = vpack.c.bf16 %v2055, %v2053
        %v2112 = vpack.c.bf16 %v2056, %v2054
        %v2113 = vpack.c.bf16 %v2059, %v2057
        %v2114 = vpack.c.bf16 %v2060, %v2058
        %v2115 = vpack.c.bf16 %v2063, %v2061
        %v2116 = vpack.c.bf16 %v2064, %v2062
        %v2117 = vpack.c.bf16 %v2067, %v2065
        %v2118 = vpack.c.bf16 %v2068, %v2066
        %v2119 = vpack.c.bf16 %v2071, %v2069
        %v2120 = vpack.c.bf16 %v2072, %v2070
        %v2121 = vpack.c.bf16 %v2075, %v2073
        %v2122 = vpack.c.bf16 %v2076, %v2074
        %v2123 = vpack.c.bf16 %v2079, %v2077
        %v2124 = vpack.c.bf16 %v2080, %v2078
        %v2125 = vpack.c.bf16 %v2083, %v2081
        %v2126 = vpack.c.bf16 %v2084, %v2082
        %v2127 = vpack.c.bf16 %v2087, %v2085
        %v2128 = vpack.c.bf16 %v2088, %v2086
        %v2129 = vpack.c.bf16 %v2091, %v2089
        %v2130 = vpack.c.bf16 %v2092, %v2090
        %v2131 = vpack.c.bf16 %v2095, %v2093
        %v2132 = vpack.c.bf16 %v2096, %v2094
        %v2133 = vpack.c.bf16 %v2099, %v2097
        %v2134 = vpack.c.bf16 %v2100, %v2098
        %v2135 = vpack.c.bf16 %v2103, %v2101
        %v2136 = vpack.c.bf16 %v2104, %v2102
        %v2137 = vld [vmem:[%s3] sm:$0xf]
        %v2138 = vld [vmem:[%s3 + $0x4] sm:$0xf]
        %v2139 = vld [vmem:[%s3 + $0x8] sm:$0xf]
        %v2140 = vld [vmem:[%s3 + $0xc] sm:$0xf]
        %v2141 = vld [vmem:[%s3 + $0x10] sm:$0xf]
        %v2142 = vld [vmem:[%s3 + $0x14] sm:$0xf]
        %v2143 = vld [vmem:[%s3 + $0x18] sm:$0xf]
        %v2144 = vld [vmem:[%s3 + $0x1c] sm:$0xf]
        %v2145 = vld [vmem:[%s3 + $0x20] sm:$0xf]
        %v2146 = vld [vmem:[%s3 + $0x24] sm:$0xf]
        %v2147 = vld [vmem:[%s3 + $0x28] sm:$0xf]
        %v2148 = vld [vmem:[%s3 + $0x2c] sm:$0xf]
        %v2149 = vld [vmem:[%s3 + $0x30] sm:$0xf]
        %v2150 = vld [vmem:[%s3 + $0x34] sm:$0xf]
        %v2151 = vld [vmem:[%s3 + $0x38] sm:$0xf]
        %v2152 = vld [vmem:[%s3 + $0x3c] sm:$0xf]
        %v2153 = vld [vmem:[%s3 + $0x40] sm:$0xf]
        %v2154 = vld [vmem:[%s3 + $0x44] sm:$0xf]
        %v2155 = vld [vmem:[%s3 + $0x48] sm:$0xf]
        %v2156 = vld [vmem:[%s3 + $0x4c] sm:$0xf]
        %v2157 = vld [vmem:[%s3 + $0x50] sm:$0xf]
        %v2158 = vld [vmem:[%s3 + $0x54] sm:$0xf]
        %v2159 = vld [vmem:[%s3 + $0x58] sm:$0xf]
        %v2160 = vld [vmem:[%s3 + $0x5c] sm:$0xf]
        %v2161 = vld [vmem:[%s3 + $0x60] sm:$0xf]
        %v2162 = vld [vmem:[%s3 + $0x64] sm:$0xf]
        %v2163 = vld [vmem:[%s3 + $0x68] sm:$0xf]
        %v2164 = vld [vmem:[%s3 + $0x6c] sm:$0xf]
        %v2165 = vld [vmem:[%s3 + $0x70] sm:$0xf]
        %v2166 = vld [vmem:[%s3 + $0x74] sm:$0xf]
        %v2167 = vld [vmem:[%s3 + $0x78] sm:$0xf]
        %v2168 = vld [vmem:[%s3 + $0x7c] sm:$0xf]
        %v2169 = vld [vmem:[%s4] sm:$0x1]
        %v2171 = vlaneseq
        %v2172 = vshrl.u32 %v2171, 7
        %v2173 = vsub.s32 0, %v2172
        %v2174 = vrot.slane %v2169, %v2173
        %v2208 = vunpack.c.l.b16 %v2137
        %v2209 = vunpack.c.l.b16 %v2138
        %v2210 = vunpack.c.l.b16 %v2139
        %v2211 = vunpack.c.l.b16 %v2140
        %v2212 = vunpack.c.l.b16 %v2141
        %v2213 = vunpack.c.l.b16 %v2142
        %v2214 = vunpack.c.l.b16 %v2143
        %v2215 = vunpack.c.l.b16 %v2144
        %v2216 = vunpack.c.l.b16 %v2145
        %v2217 = vunpack.c.l.b16 %v2146
        %v2218 = vunpack.c.l.b16 %v2147
        %v2219 = vunpack.c.l.b16 %v2148
        %v2220 = vunpack.c.l.b16 %v2149
        %v2221 = vunpack.c.l.b16 %v2150
        %v2222 = vunpack.c.l.b16 %v2151
        %v2223 = vunpack.c.l.b16 %v2152
        %v2224 = vunpack.c.l.b16 %v2153
        %v2225 = vunpack.c.l.b16 %v2154
        %v2226 = vunpack.c.l.b16 %v2155
        %v2227 = vunpack.c.l.b16 %v2156
        %v2228 = vunpack.c.l.b16 %v2157
        %v2229 = vunpack.c.l.b16 %v2158
        %v2230 = vunpack.c.l.b16 %v2159
        %v2231 = vunpack.c.l.b16 %v2160
        %v2232 = vunpack.c.l.b16 %v2161
        %v2233 = vunpack.c.l.b16 %v2162
        %v2234 = vunpack.c.l.b16 %v2163
        %v2235 = vunpack.c.l.b16 %v2164
        %v2236 = vunpack.c.l.b16 %v2165
        %v2237 = vunpack.c.l.b16 %v2166
        %v2238 = vunpack.c.l.b16 %v2167
        %v2239 = vunpack.c.l.b16 %v2168
        %v2240 = vpack.c.b16 %v2209, %v2208
        %v2241 = vpack.c.b16 %v2211, %v2210
        %v2242 = vpack.c.b16 %v2213, %v2212
        %v2243 = vpack.c.b16 %v2215, %v2214
        %v2244 = vpack.c.b16 %v2217, %v2216
        %v2245 = vpack.c.b16 %v2219, %v2218
        %v2246 = vpack.c.b16 %v2221, %v2220
        %v2247 = vpack.c.b16 %v2223, %v2222
        %v2248 = vpack.c.b16 %v2225, %v2224
        %v2249 = vpack.c.b16 %v2227, %v2226
        %v2250 = vpack.c.b16 %v2229, %v2228
        %v2251 = vpack.c.b16 %v2231, %v2230
        %v2252 = vpack.c.b16 %v2233, %v2232
        %v2253 = vpack.c.b16 %v2235, %v2234
        %v2254 = vpack.c.b16 %v2237, %v2236
        %v2255 = vpack.c.b16 %v2239, %v2238
        %2272 = vmatprep.subr.bf16.mxu0 0
        %2273 = vmatpush1.bf16.msra.mxu0 %v2240
        %2274 = vmatprep.subr.bf16.mxu0 0
        %2275 = vmatpush1.bf16.msra.mxu0 %v2241
        %2276 = vmatprep.subr.bf16.mxu0 0
        %2277 = vmatpush1.bf16.msra.mxu0 %v2242
        %2278 = vmatprep.subr.bf16.mxu0 0
        %2279 = vmatpush1.bf16.msra.mxu0 %v2243
        %2280 = vmatprep.subr.bf16.mxu0 0
        %2281 = vmatpush1.bf16.msra.mxu0 %v2244
        %2282 = vmatprep.subr.bf16.mxu0 0
        %2283 = vmatpush1.bf16.msra.mxu0 %v2245
        %2284 = vmatprep.subr.bf16.mxu0 0
        %2285 = vmatpush1.bf16.msra.mxu0 %v2246
        %2286 = vmatprep.subr.bf16.mxu0 0
        %2287 = vmatpush1.bf16.msra.mxu0 %v2247
        %2288 = vmatprep.subr.bf16.mxu0 0
        %2289 = vmatpush1.bf16.msra.mxu0 %v2248
        %2290 = vmatprep.subr.bf16.mxu0 0
        %2291 = vmatpush1.bf16.msra.mxu0 %v2249
        %2292 = vmatprep.subr.bf16.mxu0 0
        %2293 = vmatpush1.bf16.msra.mxu0 %v2250
        %2294 = vmatprep.subr.bf16.mxu0 0
        %2295 = vmatpush1.bf16.msra.mxu0 %v2251
        %2296 = vmatprep.subr.bf16.mxu0 0
        %2297 = vmatpush1.bf16.msra.mxu0 %v2252
        %2298 = vmatprep.subr.bf16.mxu0 0
        %2299 = vmatpush1.bf16.msra.mxu0 %v2253
        %2300 = vmatprep.subr.bf16.mxu0 0
        %2301 = vmatpush1.bf16.msra.mxu0 %v2254
        %2302 = vmatprep.subr.bf16.mxu0 0
        %2303 = vmatpush1.bf16.msra.mxu0 %v2255
        %2304 = vmatprep.mubr.bf16.mxu0 %v2106
        %2305 = vmatmul.mubr.bf16.gmra.mrb[0].mxu0 %v2105
        %v2306 = vpop.f32.mrb[0].mxu0
        %v2307 = vadd.f32 %v2174, %v2306
        %v2308 = vpop.f32.mrb[0].mxu0
        %v2309 = vpop.f32.mrb[0].mxu0
        %v2310 = vadd.f32 %v2174, %v2309
        %v2311 = vpop.f32.mrb[0].mxu0
        %2312 = vmatprep.mubr.bf16.mxu0 %v2108
        %2313 = vmatmul.mubr.bf16.gmra.mrb[0].mxu0 %v2107
        %v2314 = vpop.f32.mrb[0].mxu0
        %v2315 = vadd.f32 %v2174, %v2314
        %v2316 = vpop.f32.mrb[0].mxu0
        %v2317 = vpop.f32.mrb[0].mxu0
        %v2318 = vadd.f32 %v2174, %v2317
        %v2319 = vpop.f32.mrb[0].mxu0
        %2320 = vmatprep.mubr.bf16.mxu0 %v2110
        %2321 = vmatmul.mubr.bf16.gmra.mrb[0].mxu0 %v2109
        %v2322 = vpop.f32.mrb[0].mxu0
        %v2323 = vadd.f32 %v2174, %v2322
        %v2324 = vpop.f32.mrb[0].mxu0
        %v2325 = vpop.f32.mrb[0].mxu0
        %v2326 = vadd.f32 %v2174, %v2325
        %v2327 = vpop.f32.mrb[0].mxu0
        %2328 = vmatprep.mubr.bf16.mxu0 %v2112
        %2329 = vmatmul.mubr.bf16.gmra.mrb[0].mxu0 %v2111
        %v2330 = vpop.f32.mrb[0].mxu0
        %v2331 = vadd.f32 %v2174, %v2330
        %v2332 = vpop.f32.mrb[0].mxu0
        %v2333 = vpop.f32.mrb[0].mxu0
        %v2334 = vadd.f32 %v2174, %v2333
        %v2335 = vpop.f32.mrb[0].mxu0
        %2336 = vmatprep.mubr.bf16.mxu0 %v2114
        %2337 = vmatmul.mubr.bf16.gmra.mrb[0].mxu0 %v2113
        %v2338 = vpop.f32.mrb[0].mxu0
        %v2339 = vadd.f32 %v2174, %v2338
        %v2340 = vpop.f32.mrb[0].mxu0
        %v2341 = vpop.f32.mrb[0].mxu0
        %v2342 = vadd.f32 %v2174, %v2341
        %v2343 = vpop.f32.mrb[0].mxu0
        %2344 = vmatprep.mubr.bf16.mxu0 %v2116
        %2345 = vmatmul.mubr.bf16.gmra.mrb[0].mxu0 %v2115
        %v2346 = vpop.f32.mrb[0].mxu0
        %v2347 = vadd.f32 %v2174, %v2346
        %v2348 = vpop.f32.mrb[0].mxu0
        %v2349 = vpop.f32.mrb[0].mxu0
        %v2350 = vadd.f32 %v2174, %v2349
        %v2351 = vpop.f32.mrb[0].mxu0
        %2352 = vmatprep.mubr.bf16.mxu0 %v2118
        %2353 = vmatmul.mubr.bf16.gmra.mrb[0].mxu0 %v2117
        %v2354 = vpop.f32.mrb[0].mxu0
        %v2355 = vadd.f32 %v2174, %v2354
        %v2356 = vpop.f32.mrb[0].mxu0
        %v2357 = vpop.f32.mrb[0].mxu0
        %v2358 = vadd.f32 %v2174, %v2357
        %v2359 = vpop.f32.mrb[0].mxu0
        %2360 = vmatprep.mubr.bf16.mxu0 %v2120
        %2361 = vmatmul.mubr.bf16.gmra.mrb[0].mxu0 %v2119
        %v2362 = vpop.f32.mrb[0].mxu0
        %v2363 = vadd.f32 %v2174, %v2362
        %v2364 = vpop.f32.mrb[0].mxu0
        %v2365 = vpop.f32.mrb[0].mxu0
        %v2366 = vadd.f32 %v2174, %v2365
        %v2367 = vpop.f32.mrb[0].mxu0
        %2368 = vmatprep.mubr.bf16.mxu0 %v2122
        %2369 = vmatmul.mubr.bf16.gmra.mrb[0].mxu0 %v2121
        %v2370 = vpop.f32.mrb[0].mxu0
        %v2371 = vadd.f32 %v2174, %v2370
        %v2372 = vpop.f32.mrb[0].mxu0
        %v2373 = vpop.f32.mrb[0].mxu0
        %v2374 = vadd.f32 %v2174, %v2373
        %v2375 = vpop.f32.mrb[0].mxu0
        %2376 = vmatprep.mubr.bf16.mxu0 %v2124
        %2377 = vmatmul.mubr.bf16.gmra.mrb[0].mxu0 %v2123
        %v2378 = vpop.f32.mrb[0].mxu0
        %v2379 = vadd.f32 %v2174, %v2378
        %v2380 = vpop.f32.mrb[0].mxu0
        %v2381 = vpop.f32.mrb[0].mxu0
        %v2382 = vadd.f32 %v2174, %v2381
        %v2383 = vpop.f32.mrb[0].mxu0
        %2384 = vmatprep.mubr.bf16.mxu0 %v2126
        %2385 = vmatmul.mubr.bf16.gmra.mrb[0].mxu0 %v2125
        %v2386 = vpop.f32.mrb[0].mxu0
        %v2387 = vadd.f32 %v2174, %v2386
        %v2388 = vpop.f32.mrb[0].mxu0
        %v2389 = vpop.f32.mrb[0].mxu0
        %v2390 = vadd.f32 %v2174, %v2389
        %v2391 = vpop.f32.mrb[0].mxu0
        %2392 = vmatprep.mubr.bf16.mxu0 %v2128
        %2393 = vmatmul.mubr.bf16.gmra.mrb[0].mxu0 %v2127
        %v2394 = vpop.f32.mrb[0].mxu0
        %v2395 = vadd.f32 %v2174, %v2394
        %v2396 = vpop.f32.mrb[0].mxu0
        %v2397 = vpop.f32.mrb[0].mxu0
        %v2398 = vadd.f32 %v2174, %v2397
        %v2399 = vpop.f32.mrb[0].mxu0
        %2400 = vmatprep.mubr.bf16.mxu0 %v2130
        %2401 = vmatmul.mubr.bf16.gmra.mrb[0].mxu0 %v2129
        %v2402 = vpop.f32.mrb[0].mxu0
        %v2403 = vadd.f32 %v2174, %v2402
        %v2404 = vpop.f32.mrb[0].mxu0
        %v2405 = vpop.f32.mrb[0].mxu0
        %v2406 = vadd.f32 %v2174, %v2405
        %v2407 = vpop.f32.mrb[0].mxu0
        %2408 = vmatprep.mubr.bf16.mxu0 %v2132
        %2409 = vmatmul.mubr.bf16.gmra.mrb[0].mxu0 %v2131
        %v2410 = vpop.f32.mrb[0].mxu0
        %v2411 = vadd.f32 %v2174, %v2410
        %v2412 = vpop.f32.mrb[0].mxu0
        %v2413 = vpop.f32.mrb[0].mxu0
        %v2414 = vadd.f32 %v2174, %v2413
        %v2415 = vpop.f32.mrb[0].mxu0
        %2416 = vmatprep.mubr.bf16.mxu0 %v2134
        %2417 = vmatmul.mubr.bf16.gmra.mrb[0].mxu0 %v2133
        %v2418 = vpop.f32.mrb[0].mxu0
        %v2419 = vadd.f32 %v2174, %v2418
        %v2420 = vpop.f32.mrb[0].mxu0
        %v2421 = vpop.f32.mrb[0].mxu0
        %v2422 = vadd.f32 %v2174, %v2421
        %v2423 = vpop.f32.mrb[0].mxu0
        %2424 = vmatprep.mubr.bf16.mxu0 %v2136
        %2425 = vmatmul.mubr.bf16.gmra.mrb[0].mxu0 %v2135
        %v2426 = vpop.f32.mrb[0].mxu0
        %v2427 = vadd.f32 %v2174, %v2426
        %v2428 = vpop.f32.mrb[0].mxu0
        %v2429 = vpop.f32.mrb[0].mxu0
        %v2430 = vadd.f32 %v2174, %v2429
        %v2431 = vpop.f32.mrb[0].mxu0
        %2432 = vdwg.mxu0
        %v2433 = vmax.f32 %v2307, 0.0
        %v2434 = vmax.f32 %v2310, 0.0
        %v2435 = vmax.f32 %v2315, 0.0
        %v2436 = vmax.f32 %v2318, 0.0
        %v2437 = vmax.f32 %v2323, 0.0
        %v2438 = vmax.f32 %v2326, 0.0
        %v2439 = vmax.f32 %v2331, 0.0
        %v2440 = vmax.f32 %v2334, 0.0
        %v2441 = vmax.f32 %v2339, 0.0
        %v2442 = vmax.f32 %v2342, 0.0
        %v2443 = vmax.f32 %v2347, 0.0
        %v2444 = vmax.f32 %v2350, 0.0
        %v2445 = vmax.f32 %v2355, 0.0
        %v2446 = vmax.f32 %v2358, 0.0
        %v2447 = vmax.f32 %v2363, 0.0
        %v2448 = vmax.f32 %v2366, 0.0
        %v2449 = vmax.f32 %v2371, 0.0
        %v2450 = vmax.f32 %v2374, 0.0
        %v2451 = vmax.f32 %v2379, 0.0
        %v2452 = vmax.f32 %v2382, 0.0
        %v2453 = vmax.f32 %v2387, 0.0
        %v2454 = vmax.f32 %v2390, 0.0
        %v2455 = vmax.f32 %v2395, 0.0
        %v2456 = vmax.f32 %v2398, 0.0
        %v2457 = vmax.f32 %v2403, 0.0
        %v2458 = vmax.f32 %v2406, 0.0
        %v2459 = vmax.f32 %v2411, 0.0
        %v2460 = vmax.f32 %v2414, 0.0
        %v2461 = vmax.f32 %v2419, 0.0
        %v2462 = vmax.f32 %v2422, 0.0
        %v2463 = vmax.f32 %v2427, 0.0
        %v2464 = vmax.f32 %v2430, 0.0
        %v2465 = vpack.c.bf16 %v2434, %v2433
        %v2466 = vpack.c.bf16 %v2436, %v2435
        %v2467 = vpack.c.bf16 %v2438, %v2437
        %v2468 = vpack.c.bf16 %v2440, %v2439
        %v2469 = vpack.c.bf16 %v2442, %v2441
        %v2470 = vpack.c.bf16 %v2444, %v2443
        %v2471 = vpack.c.bf16 %v2446, %v2445
        %v2472 = vpack.c.bf16 %v2448, %v2447
        %v2473 = vpack.c.bf16 %v2450, %v2449
        %v2474 = vpack.c.bf16 %v2452, %v2451
        %v2475 = vpack.c.bf16 %v2454, %v2453
        %v2476 = vpack.c.bf16 %v2456, %v2455
        %v2477 = vpack.c.bf16 %v2458, %v2457
        %v2478 = vpack.c.bf16 %v2460, %v2459
        %v2479 = vpack.c.bf16 %v2462, %v2461
        %v2480 = vpack.c.bf16 %v2464, %v2463
        %v2481 = vld [vmem:[%s5] sm:$0xf]
        %v2482 = vld [vmem:[%s5 + $0x4] sm:$0xf]
        %v2483 = vld [vmem:[%s5 + $0x8] sm:$0xf]
        %v2484 = vld [vmem:[%s5 + $0xc] sm:$0xf]
        %v2485 = vld [vmem:[%s5 + $0x10] sm:$0xf]
        %v2486 = vld [vmem:[%s5 + $0x14] sm:$0xf]
        %v2487 = vld [vmem:[%s5 + $0x18] sm:$0xf]
        %v2488 = vld [vmem:[%s5 + $0x1c] sm:$0xf]
        %v2489 = vld [vmem:[%s5 + $0x20] sm:$0xf]
        %v2490 = vld [vmem:[%s5 + $0x24] sm:$0xf]
        %v2491 = vld [vmem:[%s5 + $0x28] sm:$0xf]
        %v2492 = vld [vmem:[%s5 + $0x2c] sm:$0xf]
        %v2493 = vld [vmem:[%s5 + $0x30] sm:$0xf]
        %v2494 = vld [vmem:[%s5 + $0x34] sm:$0xf]
        %v2495 = vld [vmem:[%s5 + $0x38] sm:$0xf]
        %v2496 = vld [vmem:[%s5 + $0x3c] sm:$0xf]
        %v2497 = vld [vmem:[%s6] sm:$0x1]
        %v2499 = vlaneseq
        %v2500 = vshrl.u32 %v2499, 7
        %v2501 = vsub.s32 0, %v2500
        %v2502 = vrot.slane %v2497, %v2501
        %v2520 = vunpack.c.l.b16 %v2481
        %v2521 = vunpack.c.l.b16 %v2482
        %v2522 = vunpack.c.l.b16 %v2483
        %v2523 = vunpack.c.l.b16 %v2484
        %v2524 = vunpack.c.l.b16 %v2485
        %v2525 = vunpack.c.l.b16 %v2486
        %v2526 = vunpack.c.l.b16 %v2487
        %v2527 = vunpack.c.l.b16 %v2488
        %v2528 = vunpack.c.l.b16 %v2489
        %v2529 = vunpack.c.l.b16 %v2490
        %v2530 = vunpack.c.l.b16 %v2491
        %v2531 = vunpack.c.l.b16 %v2492
        %v2532 = vunpack.c.l.b16 %v2493
        %v2533 = vunpack.c.l.b16 %v2494
        %v2534 = vunpack.c.l.b16 %v2495
        %v2535 = vunpack.c.l.b16 %v2496
        %v2536 = vpack.c.b16 %v2521, %v2520
        %v2537 = vpack.c.b16 %v2523, %v2522
        %v2538 = vpack.c.b16 %v2525, %v2524
        %v2539 = vpack.c.b16 %v2527, %v2526
        %v2540 = vpack.c.b16 %v2529, %v2528
        %v2541 = vpack.c.b16 %v2531, %v2530
        %v2542 = vpack.c.b16 %v2533, %v2532
        %v2543 = vpack.c.b16 %v2535, %v2534
        %2552 = vmatprep.subr.bf16.mxu0 0
        %2553 = vmatpush1.bf16.msra.mxu0 %v2536
        %2554 = vmatprep.subr.bf16.mxu0 0
        %2555 = vmatpush1.bf16.msra.mxu0 %v2537
        %2556 = vmatprep.subr.bf16.mxu0 0
        %2557 = vmatpush1.bf16.msra.mxu0 %v2538
        %2558 = vmatprep.subr.bf16.mxu0 0
        %2559 = vmatpush1.bf16.msra.mxu0 %v2539
        %2560 = vmatprep.subr.bf16.mxu0 0
        %2561 = vmatpush1.bf16.msra.mxu0 %v2540
        %2562 = vmatprep.subr.bf16.mxu0 0
        %2563 = vmatpush1.bf16.msra.mxu0 %v2541
        %2564 = vmatprep.subr.bf16.mxu0 0
        %2565 = vmatpush1.bf16.msra.mxu0 %v2542
        %2566 = vmatprep.subr.bf16.mxu0 0
        %2567 = vmatpush1.bf16.msra.mxu0 %v2543
        %2568 = vmatprep.subr.bf16.mxu0 0
        %2569 = vmatpush1.bf16.msra.mxu0 0
        %2570 = vmatprep.subr.bf16.mxu0 0
        %2571 = vmatpush1.bf16.msra.mxu0 0
        %2572 = vmatprep.subr.bf16.mxu0 0
        %2573 = vmatpush1.bf16.msra.mxu0 0
        %2574 = vmatprep.subr.bf16.mxu0 0
        %2575 = vmatpush1.bf16.msra.mxu0 0
        %2576 = vmatprep.subr.bf16.mxu0 0
        %2577 = vmatpush1.bf16.msra.mxu0 0
        %2578 = vmatprep.subr.bf16.mxu0 0
        %2579 = vmatpush1.bf16.msra.mxu0 0
        %2580 = vmatprep.subr.bf16.mxu0 0
        %2581 = vmatpush1.bf16.msra.mxu0 0
        %2582 = vmatprep.subr.bf16.mxu0 0
        %2583 = vmatpush1.bf16.msra.mxu0 0
        %2584 = vmatprep.mubr.bf16.mxu0 0
        %2585 = vmatmul.mubr.bf16.gmra.mrb[0].mxu0 %v2465
        %v2586 = vpop.f32.mrb[0].mxu0
        %v2587 = vadd.f32 %v2502, %v2586
        %v2588 = vpop.f32.mrb[0].mxu0
        %v2589 = vpop.f32.mrb[0].mxu0
        %v2590 = vadd.f32 %v2502, %v2589
        %v2591 = vpop.f32.mrb[0].mxu0
        %2592 = vmatprep.mubr.bf16.mxu0 0
        %2593 = vmatmul.mubr.bf16.gmra.mrb[0].mxu0 %v2466
        %v2594 = vpop.f32.mrb[0].mxu0
        %v2595 = vadd.f32 %v2502, %v2594
        %v2596 = vpop.f32.mrb[0].mxu0
        %v2597 = vpop.f32.mrb[0].mxu0
        %v2598 = vadd.f32 %v2502, %v2597
        %v2599 = vpop.f32.mrb[0].mxu0
        %2600 = vmatprep.mubr.bf16.mxu0 0
        %2601 = vmatmul.mubr.bf16.gmra.mrb[0].mxu0 %v2467
        %v2602 = vpop.f32.mrb[0].mxu0
        %v2603 = vadd.f32 %v2502, %v2602
        %v2604 = vpop.f32.mrb[0].mxu0
        %v2605 = vpop.f32.mrb[0].mxu0
        %v2606 = vadd.f32 %v2502, %v2605
        %v2607 = vpop.f32.mrb[0].mxu0
        %2608 = vmatprep.mubr.bf16.mxu0 0
        %2609 = vmatmul.mubr.bf16.gmra.mrb[0].mxu0 %v2468
        %v2610 = vpop.f32.mrb[0].mxu0
        %v2611 = vadd.f32 %v2502, %v2610
        %v2612 = vpop.f32.mrb[0].mxu0
        %v2613 = vpop.f32.mrb[0].mxu0
        %v2614 = vadd.f32 %v2502, %v2613
        %v2615 = vpop.f32.mrb[0].mxu0
        %2616 = vmatprep.mubr.bf16.mxu0 0
        %2617 = vmatmul.mubr.bf16.gmra.mrb[0].mxu0 %v2469
        %v2618 = vpop.f32.mrb[0].mxu0
        %v2619 = vadd.f32 %v2502, %v2618
        %v2620 = vpop.f32.mrb[0].mxu0
        %v2621 = vpop.f32.mrb[0].mxu0
        %v2622 = vadd.f32 %v2502, %v2621
        %v2623 = vpop.f32.mrb[0].mxu0
        %2624 = vmatprep.mubr.bf16.mxu0 0
        %2625 = vmatmul.mubr.bf16.gmra.mrb[0].mxu0 %v2470
        %v2626 = vpop.f32.mrb[0].mxu0
        %v2627 = vadd.f32 %v2502, %v2626
        %v2628 = vpop.f32.mrb[0].mxu0
        %v2629 = vpop.f32.mrb[0].mxu0
        %v2630 = vadd.f32 %v2502, %v2629
        %v2631 = vpop.f32.mrb[0].mxu0
        %2632 = vmatprep.mubr.bf16.mxu0 0
        %2633 = vmatmul.mubr.bf16.gmra.mrb[0].mxu0 %v2471
        %v2634 = vpop.f32.mrb[0].mxu0
        %v2635 = vadd.f32 %v2502, %v2634
        %v2636 = vpop.f32.mrb[0].mxu0
        %v2637 = vpop.f32.mrb[0].mxu0
        %v2638 = vadd.f32 %v2502, %v2637
        %v2639 = vpop.f32.mrb[0].mxu0
        %2640 = vmatprep.mubr.bf16.mxu0 0
        %2641 = vmatmul.mubr.bf16.gmra.mrb[0].mxu0 %v2472
        %v2642 = vpop.f32.mrb[0].mxu0
        %v2643 = vadd.f32 %v2502, %v2642
        %v2644 = vpop.f32.mrb[0].mxu0
        %v2645 = vpop.f32.mrb[0].mxu0
        %v2646 = vadd.f32 %v2502, %v2645
        %v2647 = vpop.f32.mrb[0].mxu0
        %2648 = vmatprep.mubr.bf16.mxu0 0
        %2649 = vmatmul.mubr.bf16.gmra.mrb[0].mxu0 %v2473
        %v2650 = vpop.f32.mrb[0].mxu0
        %v2651 = vadd.f32 %v2502, %v2650
        %v2652 = vpop.f32.mrb[0].mxu0
        %v2653 = vpop.f32.mrb[0].mxu0
        %v2654 = vadd.f32 %v2502, %v2653
        %v2655 = vpop.f32.mrb[0].mxu0
        %2656 = vmatprep.mubr.bf16.mxu0 0
        %2657 = vmatmul.mubr.bf16.gmra.mrb[0].mxu0 %v2474
        %v2658 = vpop.f32.mrb[0].mxu0
        %v2659 = vadd.f32 %v2502, %v2658
        %v2660 = vpop.f32.mrb[0].mxu0
        %v2661 = vpop.f32.mrb[0].mxu0
        %v2662 = vadd.f32 %v2502, %v2661
        %v2663 = vpop.f32.mrb[0].mxu0
        %2664 = vmatprep.mubr.bf16.mxu0 0
        %2665 = vmatmul.mubr.bf16.gmra.mrb[0].mxu0 %v2475
        %v2666 = vpop.f32.mrb[0].mxu0
        %v2667 = vadd.f32 %v2502, %v2666
        %v2668 = vpop.f32.mrb[0].mxu0
        %v2669 = vpop.f32.mrb[0].mxu0
        %v2670 = vadd.f32 %v2502, %v2669
        %v2671 = vpop.f32.mrb[0].mxu0
        %2672 = vmatprep.mubr.bf16.mxu0 0
        %2673 = vmatmul.mubr.bf16.gmra.mrb[0].mxu0 %v2476
        %v2674 = vpop.f32.mrb[0].mxu0
        %v2675 = vadd.f32 %v2502, %v2674
        %v2676 = vpop.f32.mrb[0].mxu0
        %v2677 = vpop.f32.mrb[0].mxu0
        %v2678 = vadd.f32 %v2502, %v2677
        %v2679 = vpop.f32.mrb[0].mxu0
        %2680 = vmatprep.mubr.bf16.mxu0 0
        %2681 = vmatmul.mubr.bf16.gmra.mrb[0].mxu0 %v2477
        %v2682 = vpop.f32.mrb[0].mxu0
        %v2683 = vadd.f32 %v2502, %v2682
        %v2684 = vpop.f32.mrb[0].mxu0
        %v2685 = vpop.f32.mrb[0].mxu0
        %v2686 = vadd.f32 %v2502, %v2685
        %v2687 = vpop.f32.mrb[0].mxu0
        %2688 = vmatprep.mubr.bf16.mxu0 0
        %2689 = vmatmul.mubr.bf16.gmra.mrb[0].mxu0 %v2478
        %v2690 = vpop.f32.mrb[0].mxu0
        %v2691 = vadd.f32 %v2502, %v2690
        %v2692 = vpop.f32.mrb[0].mxu0
        %v2693 = vpop.f32.mrb[0].mxu0
        %v2694 = vadd.f32 %v2502, %v2693
        %v2695 = vpop.f32.mrb[0].mxu0
        %2696 = vmatprep.mubr.bf16.mxu0 0
        %2697 = vmatmul.mubr.bf16.gmra.mrb[0].mxu0 %v2479
        %v2698 = vpop.f32.mrb[0].mxu0
        %v2699 = vadd.f32 %v2502, %v2698
        %v2700 = vpop.f32.mrb[0].mxu0
        %v2701 = vpop.f32.mrb[0].mxu0
        %v2702 = vadd.f32 %v2502, %v2701
        %v2703 = vpop.f32.mrb[0].mxu0
        %2704 = vmatprep.mubr.bf16.mxu0 0
        %2705 = vmatmul.mubr.bf16.gmra.mrb[0].mxu0 %v2480
        %v2706 = vpop.f32.mrb[0].mxu0
        %v2707 = vadd.f32 %v2502, %v2706
        %v2708 = vpop.f32.mrb[0].mxu0
        %v2709 = vpop.f32.mrb[0].mxu0
        %v2710 = vadd.f32 %v2502, %v2709
        %v2711 = vpop.f32.mrb[0].mxu0
        %2712 = vdwg.mxu0
        %2713 = vst [vmem:[%s274] sm:$0xff] %v2587
        %2714 = vst [vmem:[%s274 + $0x8] sm:$0xff] %v2590
        %2715 = vst [vmem:[%s274 + $0x10] sm:$0xff] %v2595
        %2716 = vst [vmem:[%s274 + $0x18] sm:$0xff] %v2598
        %2717 = vst [vmem:[%s274 + $0x20] sm:$0xff] %v2603
        %2718 = vst [vmem:[%s274 + $0x28] sm:$0xff] %v2606
        %2719 = vst [vmem:[%s274 + $0x30] sm:$0xff] %v2611
        %2720 = vst [vmem:[%s274 + $0x38] sm:$0xff] %v2614
        %2721 = vst [vmem:[%s274 + $0x40] sm:$0xff] %v2619
        %2722 = vst [vmem:[%s274 + $0x48] sm:$0xff] %v2622
        %2723 = vst [vmem:[%s274 + $0x50] sm:$0xff] %v2627
        %2724 = vst [vmem:[%s274 + $0x58] sm:$0xff] %v2630
        %2725 = vst [vmem:[%s274 + $0x60] sm:$0xff] %v2635
        %2726 = vst [vmem:[%s274 + $0x68] sm:$0xff] %v2638
        %2727 = vst [vmem:[%s274 + $0x70] sm:$0xff] %v2643
        %2728 = vst [vmem:[%s274 + $0x78] sm:$0xff] %v2646
        %2729 = vst [vmem:[%s274 + $0x80] sm:$0xff] %v2651
        %2730 = vst [vmem:[%s274 + $0x88] sm:$0xff] %v2654
        %2731 = vst [vmem:[%s274 + $0x90] sm:$0xff] %v2659
        %2732 = vst [vmem:[%s274 + $0x98] sm:$0xff] %v2662
        %2733 = vst [vmem:[%s274 + $0xa0] sm:$0xff] %v2667
        %2734 = vst [vmem:[%s274 + $0xa8] sm:$0xff] %v2670
        %2735 = vst [vmem:[%s274 + $0xb0] sm:$0xff] %v2675
        %2736 = vst [vmem:[%s274 + $0xb8] sm:$0xff] %v2678
        %2737 = vst [vmem:[%s274 + $0xc0] sm:$0xff] %v2683
        %2738 = vst [vmem:[%s274 + $0xc8] sm:$0xff] %v2686
        %2739 = vst [vmem:[%s274 + $0xd0] sm:$0xff] %v2691
        %2740 = vst [vmem:[%s274 + $0xd8] sm:$0xff] %v2694
        %2741 = vst [vmem:[%s274 + $0xe0] sm:$0xff] %v2699
        %2742 = vst [vmem:[%s274 + $0xe8] sm:$0xff] %v2702
        %2743 = vst [vmem:[%s274 + $0xf0] sm:$0xff] %v2707
        %2744 = vst [vmem:[%s274 + $0xf8] sm:$0xff] %v2710
        %s2745 = sand.u32 %s181, 1
        %s2746 = scalar_lea.sflag [#allocation3], %s2745
        %s2747 = sand.u32 %s181, 1
        %s2748 = smul.addr %s2747, 256
        %s2749 = scalar_lea.vmem [#allocation2], %s2748
        // Predicated region
        $region49: #{tpu_custom_call.1} parent=47 // pred_check
          %p2750 = pneg %p191
        $region50: #{tpu_custom_call.1} parent=47 // pred_check_branch
          %2752 = sbr.rel (%p2750) target = $region52
        $region51: #{tpu_custom_call.1} parent=47 // pred_region
          %s2753 = smul.u32 32, %s21
          %s2755 = ssub.s32 4096, 4096
          %2756 = vsyncadd %s2746, %s2755
          %s2757 = smul.addr %s2753, 128
          %s2758 = scalar_lea.hbm %s7, %s2757
          %s2759 = sshll.u32 %s2749, 4
          %s2760 = int_to_ptr.vmem [resolvable:$true] %s2759
          %2765 = dma.vmem_to_hbm [thread:$0]  %s2760, 4096, %s2758, %s2746, 128, 128, 8
        $region52: #{tpu_custom_call.1} parent=47 // pred_fallthru
          _
      $region48: #{tpu_custom_call.1} parent=5 // pred_fallthru
        _
      %p2766 = scmp.le.s32.totalorder 2, %s16
      // Predicated region
      $region53: #{tpu_custom_call.1} parent=5 // pred_check
        %p2767 = pneg %p2766
      $region54: #{tpu_custom_call.1} parent=5 // pred_check_branch
        %2769 = sbr.rel (%p2767) target = $region56
      $region55: #{tpu_custom_call.1} parent=5 // pred_region
        %s2770 = ssub.s32 %s16, 2
        // Predicated region
        $region57: #{tpu_custom_call.1} parent=55 // pred_check
          %p2771 = pneg %p197
        $region58: #{tpu_custom_call.1} parent=55 // pred_check_branch
          %2773 = sbr.rel (%p2771) target = $region60
        $region59: #{tpu_custom_call.1} parent=55 // pred_region
          %s2774 = sand.u32 %s182, 1
          %s2775 = scalar_lea.sflag [#allocation3], %s2774
          %s2776 = sand.u32 %s182, 1
          %s2777 = smul.addr %s2776, 256
          %s2778 = scalar_lea.vmem [#allocation2], %s2777
          %2779 = dma.done %s2775, 4096
        $region60: #{tpu_custom_call.1} parent=55 // pred_fallthru
          _
      $region56: #{tpu_custom_call.1} parent=5 // pred_fallthru
        _
    $region6: #{tpu_custom_call.1} parent=1 // loop_footer
      %s20 = sadd.s32 1, %s16
    $region7: #{tpu_custom_call.1} parent=1 // loop_footer_branch
      %15 = sbr.rel target = $region3
    $region8: #{tpu_custom_call.1} parent=1 // loop_exit
      _
    %2780 = vsyncpa [#allocation3], 1
    %s2781 = scalar_lea.sflag [#allocation3], 1
    %2782 = vsyncpa %s2781, 1

</llo_original>
